<compile_context>
chip_gen: v7x
topology: tpu7x:2x2x1
jax: 0.10.0
libtpu: 0.0.40
codegen_flags: <defaults>
</compile_context>

<pallas_src>
import math
import numpy as np
import jax
import jax.numpy as jnp
from jax import lax
from jax.experimental import pallas as pl
from jax.experimental.pallas import tpu as pltpu

# small, module-consistent sizes
B = 2
SEQ = 8            # word_pad_len
NTOKEN = 16        # in_chans / ntoken
D_MODEL = 32
N_HEAD = 4
HEAD_DIM = D_MODEL // N_HEAD
D_FF = 128         # dim_feedforward in the PyTorch module
N_OUT = 8          # fc output size
EPS = 1e-5         # LayerNorm eps (PyTorch default)
ROWS = B * SEQ     # rows of the fused batch*seq slab

# ----------------------------------------------------------------------------
# Constant-slab layout: (name, (rows, cols)); rows padded to multiple of 8,
# cols padded to 128, pieces stacked along sublanes.
# ----------------------------------------------------------------------------
_SLAB_LAYOUT = [
    ("we",    (NTOKEN, D_MODEL)),        # Conv1d(k=1) weight, right-mult form
    ("pe",    (ROWS, D_MODEL)),          # positional encoding + embed bias, tiled over B
    ("wq",    (D_MODEL, D_MODEL)),       # 1/sqrt(head_dim) folded in
    ("wk",    (D_MODEL, D_MODEL)),
    ("wv",    (D_MODEL, D_MODEL)),
    ("bq",    (ROWS, D_MODEL)),          # biases pre-broadcast over rows
    ("bk",    (ROWS, D_MODEL)),
    ("bv",    (ROWS, D_MODEL)),
    ("wo",    (D_MODEL, D_MODEL)),
    ("bo",    (ROWS, D_MODEL)),
    ("g1",    (ROWS, D_MODEL)),
    ("bt1",   (ROWS, D_MODEL)),
    ("w1",    (D_MODEL, D_FF)),
    ("b1",    (ROWS, D_FF)),
    ("w2",    (D_FF, D_MODEL)),
    ("b2",    (ROWS, D_MODEL)),
    ("g2",    (ROWS, D_MODEL)),
    ("bt2",   (ROWS, D_MODEL)),
    ("wf",    (D_MODEL, SEQ * N_OUT)),   # rearranged flatten-FC weight
    ("gsel",  (SEQ * N_OUT, N_OUT)),     # lane-group sum matrix
    ("hsum",  (B, ROWS)),                # per-batch row-sum matrix
    ("bf",    (B, N_OUT)),
    ("hmask", (N_HEAD * ROWS, D_MODEL)), # per-head 0/1 column masks, row-broadcast
    ("abias", (ROWS, ROWS)),             # block-diagonal additive attention bias
    ("dmask", (ROWS, SEQ * N_OUT)),      # diag-select 0/1 mask for the flatten-FC
]


def _round8(n):
    return -(-n // 8) * 8


_SLAB_OFFSETS = {}
_off = 0
for _name, (_r, _c) in _SLAB_LAYOUT:
    _SLAB_OFFSETS[_name] = (_off, _r, _c)
    _off += _round8(_r)
SLAB_ROWS = _off            # 688
SLAB_LANES = 128            # ~344 KiB f32 slab, one DMA


def transformer_kernel(x_ref, slab_ref, o_ref):
    def blk(name):
        r0, r, c = _SLAB_OFFSETS[name]
        return slab_ref[r0:r0 + r, :c]

    x = x_ref[...]                                               # (ROWS, NTOKEN)

    # --- PatchEmbed (Conv1d k=1 == per-position linear) + positional encoding ---
    src = jnp.dot(x, blk("we"), preferred_element_type=jnp.float32) + blk("pe")

    # --- Q/K/V projections (1/sqrt(head_dim) folded into wq/bq at pack time) ---
    q = jnp.dot(src, blk("wq"), preferred_element_type=jnp.float32) + blk("bq")
    k = jnp.dot(src, blk("wk"), preferred_element_type=jnp.float32) + blk("bk")
    v = jnp.dot(src, blk("wv"), preferred_element_type=jnp.float32) + blk("bv")

    abias = blk("abias")                                         # 0 / -1e30 block-diag bias
    r0_hm, _, c_hm = _SLAB_OFFSETS["hmask"]

    # --- multi-head self-attention via head column masks (no lane slices/concat).
    #     k is the same full tensor in every head's dot_general, so its internal
    #     transpose is a single shared relayout.
    attn = None
    for h in range(N_HEAD):
        hm = slab_ref[r0_hm + h * ROWS:r0_hm + (h + 1) * ROWS, :c_hm]   # (ROWS, D) 0/1
        s = lax.dot_general(q * hm, k, (((1,), (1,)), ((), ())),
                            preferred_element_type=jnp.float32) + abias  # (ROWS, ROWS)
        s = s - jnp.max(s, axis=-1, keepdims=True)
        p = jnp.exp(s)
        p = p * pl.reciprocal(jnp.sum(p, axis=-1, keepdims=True), approx=True)
        o_h = jnp.dot(p, v * hm, preferred_element_type=jnp.float32)     # nonzero only in head-h cols
        attn = o_h if attn is None else attn + o_h
    attn = jnp.dot(attn, blk("wo"), preferred_element_type=jnp.float32) + blk("bo")

    # --- residual + LayerNorm 1 (post-norm, biased variance like PyTorch) ---
    x1 = src + attn
    mu = jnp.mean(x1, axis=-1, keepdims=True)
    var = jnp.mean((x1 - mu) ** 2, axis=-1, keepdims=True)
    x1 = (x1 - mu) * lax.rsqrt(var + EPS) * blk("g1") + blk("bt1")

    # --- feed-forward (relu) + residual + LayerNorm 2 ---
    hdn = jnp.maximum(
        jnp.dot(x1, blk("w1"), preferred_element_type=jnp.float32) + blk("b1"), 0.0)
    ff = jnp.dot(hdn, blk("w2"), preferred_element_type=jnp.float32) + blk("b2")
    x2 = x1 + ff
    mu2 = jnp.mean(x2, axis=-1, keepdims=True)
    var2 = jnp.mean((x2 - mu2) ** 2, axis=-1, keepdims=True)
    x2 = (x2 - mu2) * lax.rsqrt(var2 + EPS) * blk("g2") + blk("bt2")

    # --- final Linear over the row-major flatten(SEQ*D_MODEL), without reshapes ---
    #   U[r, t*N + n] = sum_d x2[r, d] * wf[t*D + d, n];  keep t == r % SEQ (dmask),
    #   fold lane groups with gsel, sum rows per batch with hsum.
    U = jnp.dot(x2, blk("wf"), preferred_element_type=jnp.float32) * blk("dmask")
    per_row = jnp.dot(U, blk("gsel"), preferred_element_type=jnp.float32)   # (ROWS, N_OUT)
    out = jnp.dot(blk("hsum"), per_row,
                  preferred_element_type=jnp.float32) + blk("bf")           # (B, N_OUT)
    o_ref[...] = out.astype(o_ref.dtype)


def init_params(key):
    ks = jax.random.split(key, 20)

    def w(k, shape, scale=0.05):
        return (scale * jax.random.normal(k, shape)).astype(jnp.float32)

    # PositionalEncoding table (sin on even cols, cos on odd cols)
    i = np.arange(D_MODEL)
    pos = np.arange(SEQ)[:, None].astype(np.float64)
    angle = pos / np.power(10000.0, (i // 2 * 2.0) / D_MODEL)
    pe = np.where(i % 2 == 0, np.sin(angle), np.cos(angle)).astype(np.float32)

    return dict(
        we=w(ks[0], (NTOKEN, D_MODEL)),              # Conv1d(k=1) weight, right-mult form
        be=w(ks[1], (1, D_MODEL)),
        pe=jnp.asarray(pe),
        wq=w(ks[2], (D_MODEL, D_MODEL)), bq=w(ks[3], (1, D_MODEL)),
        wk=w(ks[4], (D_MODEL, D_MODEL)), bk=w(ks[5], (1, D_MODEL)),
        wv=w(ks[6], (D_MODEL, D_MODEL)), bv=w(ks[7], (1, D_MODEL)),
        wo=w(ks[8], (D_MODEL, D_MODEL)), bo=w(ks[9], (1, D_MODEL)),
        g1=1.0 + w(ks[10], (1, D_MODEL), 0.02), bt1=w(ks[11], (1, D_MODEL)),
        w1=w(ks[12], (D_MODEL, D_FF)), b1=w(ks[13], (1, D_FF)),
        w2=w(ks[14], (D_FF, D_MODEL)), b2=w(ks[15], (1, D_MODEL)),
        g2=1.0 + w(ks[16], (1, D_MODEL), 0.02), bt2=w(ks[17], (1, D_MODEL)),
        wf=w(ks[18], (SEQ * D_MODEL, N_OUT)),        # flatten-FC weight, right-mult form
        bf=w(ks[19], (1, N_OUT)),
    )


def pack_params(p):
    """One-time repack of PyTorch-style params into a single (SLAB_ROWS, 128) slab."""
    scale = 1.0 / math.sqrt(HEAD_DIM)
    f = lambda a: np.asarray(a, dtype=np.float32)

    def bcast(row_vec, rows=ROWS):
        return np.tile(f(row_vec).reshape(1, -1), (rows, 1))

    # rearrange flatten-FC weight: wf_all[d, t*N_OUT + n] = wf[t*D_MODEL + d, n]
    wf_all = np.transpose(f(p['wf']).reshape(SEQ, D_MODEL, N_OUT),
                          (1, 0, 2)).reshape(D_MODEL, SEQ * N_OUT)
    gsel = np.tile(np.eye(N_OUT, dtype=np.float32), (SEQ, 1))           # (SEQ*N, N)
    hsum = np.repeat(np.eye(B, dtype=np.float32), SEQ, axis=1)          # (B, ROWS)

    hmask = np.zeros((N_HEAD * ROWS, D_MODEL), np.float32)
    for h in range(N_HEAD):
        hmask[h * ROWS:(h + 1) * ROWS, h * HEAD_DIM:(h + 1) * HEAD_DIM] = 1.0

    rb = np.arange(ROWS)[:, None] // SEQ
    cb = np.arange(ROWS)[None, :] // SEQ
    abias = np.where(rb == cb, 0.0, -1e30).astype(np.float32)           # (ROWS, ROWS)

    rt = np.arange(ROWS)[:, None] % SEQ
    ct = np.arange(SEQ * N_OUT)[None, :] // N_OUT
    dmask = (rt == ct).astype(np.float32)                               # (ROWS, SEQ*N)

    pieces = dict(
        we=f(p['we']),
        pe=np.tile(f(p['pe']) + f(p['be']), (B, 1)),
        wq=f(p['wq']) * scale, wk=f(p['wk']), wv=f(p['wv']),
        bq=bcast(f(p['bq']) * scale), bk=bcast(p['bk']), bv=bcast(p['bv']),
        wo=f(p['wo']), bo=bcast(p['bo']),
        g1=bcast(p['g1']), bt1=bcast(p['bt1']),
        w1=f(p['w1']), b1=bcast(p['b1']),
        w2=f(p['w2']), b2=bcast(p['b2']),
        g2=bcast(p['g2']), bt2=bcast(p['bt2']),
        wf=wf_all, gsel=gsel, hsum=hsum,
        bf=np.tile(f(p['bf']), (B, 1)),
        hmask=hmask, abias=abias, dmask=dmask,
    )

    slab = np.zeros((SLAB_ROWS, SLAB_LANES), np.float32)
    for name, (r0, r, c) in _SLAB_OFFSETS.items():
        a = pieces[name]
        assert a.shape == (r, c), (name, a.shape, (r, c))
        slab[r0:r0 + r, :c] = a
    return jnp.asarray(slab)


_COST = pl.CostEstimate(
    flops=2 * (ROWS * NTOKEN * D_MODEL                      # embed
               + 3 * ROWS * D_MODEL * D_MODEL               # q/k/v
               + 2 * N_HEAD * ROWS * ROWS * D_MODEL         # scores + p@v
               + ROWS * D_MODEL * D_MODEL                   # out proj
               + 2 * ROWS * D_MODEL * D_FF                  # FFN
               + ROWS * D_MODEL * SEQ * N_OUT               # flatten-FC
               + ROWS * SEQ * N_OUT * N_OUT
               + B * ROWS * N_OUT),
    transcendentals=N_HEAD * ROWS * ROWS + N_HEAD * ROWS + 2 * ROWS,
    bytes_accessed=4 * (ROWS * NTOKEN + SLAB_ROWS * SLAB_LANES + B * N_OUT),
)


def run_model(x, slab):
    x_slab = x.reshape(ROWS, NTOKEN)
    # Single invocation, no grid: total VMEM footprint < 1 MiB (fits the scoped
    # default on v5e/v6e/v7x), exactly 2 input DMAs + 1 output DMA.
    return pl.pallas_call(
        transformer_kernel,
        out_shape=jax.ShapeDtypeStruct((B, N_OUT), jnp.float32),
        in_specs=[pl.BlockSpec(memory_space=pltpu.MemorySpace.VMEM),
                  pl.BlockSpec(memory_space=pltpu.MemorySpace.VMEM)],
        out_specs=pl.BlockSpec(memory_space=pltpu.MemorySpace.VMEM),
        cost_estimate=_COST,
    )(x_slab, slab)


def reference(x, p):
    """Pure-JAX replica of the PyTorch forward (for correctness check)."""
    src = jnp.einsum('bsn,nd->bsd', x, p['we']) + p['be']
    src = src + p['pe']
    q = jnp.einsum('bsd,de->bse', src, p['wq']) + p['bq']
    k = jnp.einsum('bsd,de->bse', src, p['wk']) + p['bk']
    v = jnp.einsum('bsd,de->bse', src, p['wv']) + p['bv']
    qh = q.reshape(B, SEQ, N_HEAD, HEAD_DIM)
    kh = k.reshape(B, SEQ, N_HEAD, HEAD_DIM)
    vh = v.reshape(B, SEQ, N_HEAD, HEAD_DIM)
    s = jnp.einsum('bqhd,bkhd->bhqk', qh, kh) / math.sqrt(HEAD_DIM)
    pa = jax.nn.softmax(s, axis=-1)
    oh = jnp.einsum('bhqk,bkhd->bqhd', pa, vh).reshape(B, SEQ, D_MODEL)
    attn = jnp.einsum('bsd,de->bse', oh, p['wo']) + p['bo']

    def ln(y, g, b):
        mu = y.mean(-1, keepdims=True)
        var = ((y - mu) ** 2).mean(-1, keepdims=True)
        return (y - mu) / jnp.sqrt(var + EPS) * g + b

    x1 = ln(src + attn, p['g1'], p['bt1'])
    ff = jnp.maximum(jnp.einsum('bsd,df->bsf', x1, p['w1']) + p['b1'], 0.0)
    ff = jnp.einsum('bsf,fd->bsd', ff, p['w2']) + p['b2']
    x2 = ln(x1 + ff, p['g2'], p['bt2'])
    flat = x2.reshape(B, SEQ * D_MODEL)
    return flat @ p['wf'] + p['bf']


if __name__ == "__main__":
    key = jax.random.PRNGKey(0)
    kx, kp = jax.random.split(key)
    x = jax.random.normal(kx, (B, SEQ, NTOKEN), dtype=jnp.float32)
    params = init_params(kp)
    slab = pack_params(params)

    scores = run_model(x, slab)
    scores = jax.block_until_ready(scores)

    ref = reference(x, params)
    np.testing.assert_allclose(np.asarray(scores), np.asarray(ref),
                               rtol=1e-3, atol=1e-3)
    print("KERNEL_OK")
</pallas_src>

<mosaic_0001>
module attributes {stable_mosaic.version = 11 : i64} {
  func.func @transformer_kernel(%arg0: memref<16x16xf32, #tpu.memory_space<vmem>>, %arg1: memref<688x128xf32, #tpu.memory_space<vmem>>, %arg2: memref<2x8xf32, #tpu.memory_space<vmem>>) attributes {dimension_semantics = [], scalar_prefetch = 0 : i64, scratch_operands = 0 : i64, tpu.core_type = #tpu.core_type<tc>} {
    %c0 = arith.constant 0 : index
    %c0_0 = arith.constant 0 : index
    %0 = vector.load %arg0[%c0, %c0_0] : memref<16x16xf32, #tpu.memory_space<vmem>>, vector<16x16xf32>
    %c0_1 = arith.constant 0 : index
    %c0_2 = arith.constant 0 : index
    %1 = vector.load %arg1[%c0_1, %c0_2] : memref<688x128xf32, #tpu.memory_space<vmem>>, vector<16x32xf32>
    %cst = arith.constant dense<0.000000e+00> : vector<16x32xf32>
    %2 = tpu.matmul %0, %1, %cst {dimension_numbers = #tpu.dot_dimension_numbers<[1], [0], [0], [1], [0, 0, 1, 1], [], []>} : vector<16x16xf32>, vector<16x32xf32>, vector<16x32xf32> -> vector<16x32xf32>
    %c16 = arith.constant 16 : index
    %c0_3 = arith.constant 0 : index
    %3 = vector.load %arg1[%c16, %c0_3] : memref<688x128xf32, #tpu.memory_space<vmem>>, vector<16x32xf32>
    %4 = arith.addf %2, %3 : vector<16x32xf32>
    %c32 = arith.constant 32 : index
    %c0_4 = arith.constant 0 : index
    %5 = vector.load %arg1[%c32, %c0_4] : memref<688x128xf32, #tpu.memory_space<vmem>>, vector<32x32xf32>
    %cst_5 = arith.constant dense<0.000000e+00> : vector<16x32xf32>
    %6 = tpu.matmul %4, %5, %cst_5 {dimension_numbers = #tpu.dot_dimension_numbers<[1], [0], [0], [1], [0, 0, 1, 1], [], []>} : vector<16x32xf32>, vector<32x32xf32>, vector<16x32xf32> -> vector<16x32xf32>
    %c128 = arith.constant 128 : index
    %c0_6 = arith.constant 0 : index
    %7 = vector.load %arg1[%c128, %c0_6] : memref<688x128xf32, #tpu.memory_space<vmem>>, vector<16x32xf32>
    %8 = arith.addf %6, %7 : vector<16x32xf32>
    %c64 = arith.constant 64 : index
    %c0_7 = arith.constant 0 : index
    %9 = vector.load %arg1[%c64, %c0_7] : memref<688x128xf32, #tpu.memory_space<vmem>>, vector<32x32xf32>
    %cst_8 = arith.constant dense<0.000000e+00> : vector<16x32xf32>
    %10 = tpu.matmul %4, %9, %cst_8 {dimension_numbers = #tpu.dot_dimension_numbers<[1], [0], [0], [1], [0, 0, 1, 1], [], []>} : vector<16x32xf32>, vector<32x32xf32>, vector<16x32xf32> -> vector<16x32xf32>
    %c144 = arith.constant 144 : index
    %c0_9 = arith.constant 0 : index
    %11 = vector.load %arg1[%c144, %c0_9] : memref<688x128xf32, #tpu.memory_space<vmem>>, vector<16x32xf32>
    %12 = arith.addf %10, %11 : vector<16x32xf32>
    %c96 = arith.constant 96 : index
    %c0_10 = arith.constant 0 : index
    %13 = vector.load %arg1[%c96, %c0_10] : memref<688x128xf32, #tpu.memory_space<vmem>>, vector<32x32xf32>
    %cst_11 = arith.constant dense<0.000000e+00> : vector<16x32xf32>
    %14 = tpu.matmul %4, %13, %cst_11 {dimension_numbers = #tpu.dot_dimension_numbers<[1], [0], [0], [1], [0, 0, 1, 1], [], []>} : vector<16x32xf32>, vector<32x32xf32>, vector<16x32xf32> -> vector<16x32xf32>
    %c160 = arith.constant 160 : index
    %c0_12 = arith.constant 0 : index
    %15 = vector.load %arg1[%c160, %c0_12] : memref<688x128xf32, #tpu.memory_space<vmem>>, vector<16x32xf32>
    %16 = arith.addf %14, %15 : vector<16x32xf32>
    %c656 = arith.constant 656 : index
    %c0_13 = arith.constant 0 : index
    %17 = vector.load %arg1[%c656, %c0_13] : memref<688x128xf32, #tpu.memory_space<vmem>>, vector<16x16xf32>
    %c592 = arith.constant 592 : index
    %c0_14 = arith.constant 0 : index
    %18 = vector.load %arg1[%c592, %c0_14] : memref<688x128xf32, #tpu.memory_space<vmem>>, vector<16x32xf32>
    %19 = arith.mulf %8, %18 : vector<16x32xf32>
    %cst_15 = arith.constant dense<0.000000e+00> : vector<16x16xf32>
    %20 = tpu.matmul %19, %12, %cst_15 {dimension_numbers = #tpu.dot_dimension_numbers<[1], [1], [0], [0], [0, 0, 1, 0], [], []>} : vector<16x32xf32>, vector<16x32xf32>, vector<16x16xf32> -> vector<16x16xf32>
    %21 = arith.addf %20, %17 : vector<16x16xf32>
    %cst_16 = arith.constant dense<0xFF800000> : vector<16xf32>
    %22 = vector.multi_reduction <maximumf>, %21, %cst_16 [1] : vector<16x16xf32> to vector<16xf32>
    %23 = vector.shape_cast %22 : vector<16xf32> to vector<16x1xf32>
    %24 = vector.broadcast %23 : vector<16x1xf32> to vector<16x16xf32>
    %25 = arith.subf %21, %24 : vector<16x16xf32>
    %26 = math.exp %25 : vector<16x16xf32>
    %cst_17 = arith.constant dense<0.000000e+00> : vector<16xf32>
    %27 = vector.multi_reduction <add>, %26, %cst_17 [1] : vector<16x16xf32> to vector<16xf32>
    %28 = vector.shape_cast %27 : vector<16xf32> to vector<16x1xf32>
    %29 = tpu.reciprocal %28 {approx = true} : vector<16x1xf32> -> vector<16x1xf32>
    %30 = vector.broadcast %29 : vector<16x1xf32> to vector<16x16xf32>
    %31 = arith.mulf %26, %30 : vector<16x16xf32>
    %32 = arith.mulf %16, %18 : vector<16x32xf32>
    %cst_18 = arith.constant dense<0.000000e+00> : vector<16x32xf32>
    %33 = tpu.matmul %31, %32, %cst_18 {dimension_numbers = #tpu.dot_dimension_numbers<[1], [0], [0], [1], [0, 0, 1, 1], [], []>} : vector<16x16xf32>, vector<16x32xf32>, vector<16x32xf32> -> vector<16x32xf32>
    %c608 = arith.constant 608 : index
    %c0_19 = arith.constant 0 : index
    %34 = vector.load %arg1[%c608, %c0_19] : memref<688x128xf32, #tpu.memory_space<vmem>>, vector<16x32xf32>
    %35 = arith.mulf %8, %34 : vector<16x32xf32>
    %cst_20 = arith.constant dense<0.000000e+00> : vector<16x16xf32>
    %36 = tpu.matmul %35, %12, %cst_20 {dimension_numbers = #tpu.dot_dimension_numbers<[1], [1], [0], [0], [0, 0, 1, 0], [], []>} : vector<16x32xf32>, vector<16x32xf32>, vector<16x16xf32> -> vector<16x16xf32>
    %37 = arith.addf %36, %17 : vector<16x16xf32>
    %cst_21 = arith.constant dense<0xFF800000> : vector<16xf32>
    %38 = vector.multi_reduction <maximumf>, %37, %cst_21 [1] : vector<16x16xf32> to vector<16xf32>
    %39 = vector.shape_cast %38 : vector<16xf32> to vector<16x1xf32>
    %40 = vector.broadcast %39 : vector<16x1xf32> to vector<16x16xf32>
    %41 = arith.subf %37, %40 : vector<16x16xf32>
    %42 = math.exp %41 : vector<16x16xf32>
    %cst_22 = arith.constant dense<0.000000e+00> : vector<16xf32>
    %43 = vector.multi_reduction <add>, %42, %cst_22 [1] : vector<16x16xf32> to vector<16xf32>
    %44 = vector.shape_cast %43 : vector<16xf32> to vector<16x1xf32>
    %45 = tpu.reciprocal %44 {approx = true} : vector<16x1xf32> -> vector<16x1xf32>
    %46 = vector.broadcast %45 : vector<16x1xf32> to vector<16x16xf32>
    %47 = arith.mulf %42, %46 : vector<16x16xf32>
    %48 = arith.mulf %16, %34 : vector<16x32xf32>
    %cst_23 = arith.constant dense<0.000000e+00> : vector<16x32xf32>
    %49 = tpu.matmul %47, %48, %cst_23 {dimension_numbers = #tpu.dot_dimension_numbers<[1], [0], [0], [1], [0, 0, 1, 1], [], []>} : vector<16x16xf32>, vector<16x32xf32>, vector<16x32xf32> -> vector<16x32xf32>
    %50 = arith.addf %33, %49 : vector<16x32xf32>
    %c624 = arith.constant 624 : index
    %c0_24 = arith.constant 0 : index
    %51 = vector.load %arg1[%c624, %c0_24] : memref<688x128xf32, #tpu.memory_space<vmem>>, vector<16x32xf32>
    %52 = arith.mulf %8, %51 : vector<16x32xf32>
    %cst_25 = arith.constant dense<0.000000e+00> : vector<16x16xf32>
    %53 = tpu.matmul %52, %12, %cst_25 {dimension_numbers = #tpu.dot_dimension_numbers<[1], [1], [0], [0], [0, 0, 1, 0], [], []>} : vector<16x32xf32>, vector<16x32xf32>, vector<16x16xf32> -> vector<16x16xf32>
    %54 = arith.addf %53, %17 : vector<16x16xf32>
    %cst_26 = arith.constant dense<0xFF800000> : vector<16xf32>
    %55 = vector.multi_reduction <maximumf>, %54, %cst_26 [1] : vector<16x16xf32> to vector<16xf32>
    %56 = vector.shape_cast %55 : vector<16xf32> to vector<16x1xf32>
    %57 = vector.broadcast %56 : vector<16x1xf32> to vector<16x16xf32>
    %58 = arith.subf %54, %57 : vector<16x16xf32>
    %59 = math.exp %58 : vector<16x16xf32>
    %cst_27 = arith.constant dense<0.000000e+00> : vector<16xf32>
    %60 = vector.multi_reduction <add>, %59, %cst_27 [1] : vector<16x16xf32> to vector<16xf32>
    %61 = vector.shape_cast %60 : vector<16xf32> to vector<16x1xf32>
    %62 = tpu.reciprocal %61 {approx = true} : vector<16x1xf32> -> vector<16x1xf32>
    %63 = vector.broadcast %62 : vector<16x1xf32> to vector<16x16xf32>
    %64 = arith.mulf %59, %63 : vector<16x16xf32>
    %65 = arith.mulf %16, %51 : vector<16x32xf32>
    %cst_28 = arith.constant dense<0.000000e+00> : vector<16x32xf32>
    %66 = tpu.matmul %64, %65, %cst_28 {dimension_numbers = #tpu.dot_dimension_numbers<[1], [0], [0], [1], [0, 0, 1, 1], [], []>} : vector<16x16xf32>, vector<16x32xf32>, vector<16x32xf32> -> vector<16x32xf32>
    %67 = arith.addf %50, %66 : vector<16x32xf32>
    %c640 = arith.constant 640 : index
    %c0_29 = arith.constant 0 : index
    %68 = vector.load %arg1[%c640, %c0_29] : memref<688x128xf32, #tpu.memory_space<vmem>>, vector<16x32xf32>
    %69 = arith.mulf %8, %68 : vector<16x32xf32>
    %cst_30 = arith.constant dense<0.000000e+00> : vector<16x16xf32>
    %70 = tpu.matmul %69, %12, %cst_30 {dimension_numbers = #tpu.dot_dimension_numbers<[1], [1], [0], [0], [0, 0, 1, 0], [], []>} : vector<16x32xf32>, vector<16x32xf32>, vector<16x16xf32> -> vector<16x16xf32>
    %71 = arith.addf %70, %17 : vector<16x16xf32>
    %cst_31 = arith.constant dense<0xFF800000> : vector<16xf32>
    %72 = vector.multi_reduction <maximumf>, %71, %cst_31 [1] : vector<16x16xf32> to vector<16xf32>
    %73 = vector.shape_cast %72 : vector<16xf32> to vector<16x1xf32>
    %74 = vector.broadcast %73 : vector<16x1xf32> to vector<16x16xf32>
    %75 = arith.subf %71, %74 : vector<16x16xf32>
    %76 = math.exp %75 : vector<16x16xf32>
    %cst_32 = arith.constant dense<0.000000e+00> : vector<16xf32>
    %77 = vector.multi_reduction <add>, %76, %cst_32 [1] : vector<16x16xf32> to vector<16xf32>
    %78 = vector.shape_cast %77 : vector<16xf32> to vector<16x1xf32>
    %79 = tpu.reciprocal %78 {approx = true} : vector<16x1xf32> -> vector<16x1xf32>
    %80 = vector.broadcast %79 : vector<16x1xf32> to vector<16x16xf32>
    %81 = arith.mulf %76, %80 : vector<16x16xf32>
    %82 = arith.mulf %16, %68 : vector<16x32xf32>
    %cst_33 = arith.constant dense<0.000000e+00> : vector<16x32xf32>
    %83 = tpu.matmul %81, %82, %cst_33 {dimension_numbers = #tpu.dot_dimension_numbers<[1], [0], [0], [1], [0, 0, 1, 1], [], []>} : vector<16x16xf32>, vector<16x32xf32>, vector<16x32xf32> -> vector<16x32xf32>
    %84 = arith.addf %67, %83 : vector<16x32xf32>
    %c176 = arith.constant 176 : index
    %c0_34 = arith.constant 0 : index
    %85 = vector.load %arg1[%c176, %c0_34] : memref<688x128xf32, #tpu.memory_space<vmem>>, vector<32x32xf32>
    %cst_35 = arith.constant dense<0.000000e+00> : vector<16x32xf32>
    %86 = tpu.matmul %84, %85, %cst_35 {dimension_numbers = #tpu.dot_dimension_numbers<[1], [0], [0], [1], [0, 0, 1, 1], [], []>} : vector<16x32xf32>, vector<32x32xf32>, vector<16x32xf32> -> vector<16x32xf32>
    %c208 = arith.constant 208 : index
    %c0_36 = arith.constant 0 : index
    %87 = vector.load %arg1[%c208, %c0_36] : memref<688x128xf32, #tpu.memory_space<vmem>>, vector<16x32xf32>
    %88 = arith.addf %86, %87 : vector<16x32xf32>
    %89 = arith.addf %4, %88 : vector<16x32xf32>
    %cst_37 = arith.constant dense<0.000000e+00> : vector<16xf32>
    %90 = vector.multi_reduction <add>, %89, %cst_37 [1] : vector<16x32xf32> to vector<16xf32>
    %91 = vector.shape_cast %90 : vector<16xf32> to vector<16x1xf32>
    %cst_38 = arith.constant 3.200000e+01 : f32
    %92 = vector.broadcast %cst_38 : f32 to vector<16x1xf32>
    %93 = arith.divf %91, %92 : vector<16x1xf32>
    %94 = vector.broadcast %93 : vector<16x1xf32> to vector<16x32xf32>
    %95 = arith.subf %89, %94 : vector<16x32xf32>
    %96 = arith.mulf %95, %95 : vector<16x32xf32>
    %cst_39 = arith.constant dense<0.000000e+00> : vector<16xf32>
    %97 = vector.multi_reduction <add>, %96, %cst_39 [1] : vector<16x32xf32> to vector<16xf32>
    %98 = vector.shape_cast %97 : vector<16xf32> to vector<16x1xf32>
    %cst_40 = arith.constant 3.200000e+01 : f32
    %99 = vector.broadcast %cst_40 : f32 to vector<16x1xf32>
    %100 = arith.divf %98, %99 : vector<16x1xf32>
    %101 = vector.broadcast %93 : vector<16x1xf32> to vector<16x32xf32>
    %102 = arith.subf %89, %101 : vector<16x32xf32>
    %cst_41 = arith.constant 9.99999974E-6 : f32
    %103 = vector.broadcast %cst_41 : f32 to vector<16x1xf32>
    %104 = arith.addf %100, %103 : vector<16x1xf32>
    %105 = math.rsqrt %104 : vector<16x1xf32>
    %106 = vector.broadcast %105 : vector<16x1xf32> to vector<16x32xf32>
    %107 = arith.mulf %102, %106 : vector<16x32xf32>
    %c224 = arith.constant 224 : index
    %c0_42 = arith.constant 0 : index
    %108 = vector.load %arg1[%c224, %c0_42] : memref<688x128xf32, #tpu.memory_space<vmem>>, vector<16x32xf32>
    %109 = arith.mulf %107, %108 : vector<16x32xf32>
    %c240 = arith.constant 240 : index
    %c0_43 = arith.constant 0 : index
    %110 = vector.load %arg1[%c240, %c0_43] : memref<688x128xf32, #tpu.memory_space<vmem>>, vector<16x32xf32>
    %111 = arith.addf %109, %110 : vector<16x32xf32>
    %c256 = arith.constant 256 : index
    %c0_44 = arith.constant 0 : index
    %112 = vector.load %arg1[%c256, %c0_44] : memref<688x128xf32, #tpu.memory_space<vmem>>, vector<32x128xf32>
    %cst_45 = arith.constant dense<0.000000e+00> : vector<16x128xf32>
    %113 = tpu.matmul %111, %112, %cst_45 {dimension_numbers = #tpu.dot_dimension_numbers<[1], [0], [0], [1], [0, 0, 1, 1], [], []>} : vector<16x32xf32>, vector<32x128xf32>, vector<16x128xf32> -> vector<16x128xf32>
    %c288 = arith.constant 288 : index
    %c0_46 = arith.constant 0 : index
    %114 = vector.load %arg1[%c288, %c0_46] : memref<688x128xf32, #tpu.memory_space<vmem>>, vector<16x128xf32>
    %115 = arith.addf %113, %114 : vector<16x128xf32>
    %cst_47 = arith.constant 0.000000e+00 : f32
    %116 = vector.broadcast %cst_47 : f32 to vector<16x128xf32>
    %117 = arith.maximumf %115, %116 : vector<16x128xf32>
    %c304 = arith.constant 304 : index
    %c0_48 = arith.constant 0 : index
    %118 = vector.load %arg1[%c304, %c0_48] : memref<688x128xf32, #tpu.memory_space<vmem>>, vector<128x32xf32>
    %cst_49 = arith.constant dense<0.000000e+00> : vector<16x32xf32>
    %119 = tpu.matmul %117, %118, %cst_49 {dimension_numbers = #tpu.dot_dimension_numbers<[1], [0], [0], [1], [0, 0, 1, 1], [], []>} : vector<16x128xf32>, vector<128x32xf32>, vector<16x32xf32> -> vector<16x32xf32>
    %c432 = arith.constant 432 : index
    %c0_50 = arith.constant 0 : index
    %120 = vector.load %arg1[%c432, %c0_50] : memref<688x128xf32, #tpu.memory_space<vmem>>, vector<16x32xf32>
    %121 = arith.addf %119, %120 : vector<16x32xf32>
    %122 = arith.addf %111, %121 : vector<16x32xf32>
    %cst_51 = arith.constant dense<0.000000e+00> : vector<16xf32>
    %123 = vector.multi_reduction <add>, %122, %cst_51 [1] : vector<16x32xf32> to vector<16xf32>
    %124 = vector.shape_cast %123 : vector<16xf32> to vector<16x1xf32>
    %cst_52 = arith.constant 3.200000e+01 : f32
    %125 = vector.broadcast %cst_52 : f32 to vector<16x1xf32>
    %126 = arith.divf %124, %125 : vector<16x1xf32>
    %127 = vector.broadcast %126 : vector<16x1xf32> to vector<16x32xf32>
    %128 = arith.subf %122, %127 : vector<16x32xf32>
    %129 = arith.mulf %128, %128 : vector<16x32xf32>
    %cst_53 = arith.constant dense<0.000000e+00> : vector<16xf32>
    %130 = vector.multi_reduction <add>, %129, %cst_53 [1] : vector<16x32xf32> to vector<16xf32>
    %131 = vector.shape_cast %130 : vector<16xf32> to vector<16x1xf32>
    %cst_54 = arith.constant 3.200000e+01 : f32
    %132 = vector.broadcast %cst_54 : f32 to vector<16x1xf32>
    %133 = arith.divf %131, %132 : vector<16x1xf32>
    %134 = vector.broadcast %126 : vector<16x1xf32> to vector<16x32xf32>
    %135 = arith.subf %122, %134 : vector<16x32xf32>
    %cst_55 = arith.constant 9.99999974E-6 : f32
    %136 = vector.broadcast %cst_55 : f32 to vector<16x1xf32>
    %137 = arith.addf %133, %136 : vector<16x1xf32>
    %138 = math.rsqrt %137 : vector<16x1xf32>
    %139 = vector.broadcast %138 : vector<16x1xf32> to vector<16x32xf32>
    %140 = arith.mulf %135, %139 : vector<16x32xf32>
    %c448 = arith.constant 448 : index
    %c0_56 = arith.constant 0 : index
    %141 = vector.load %arg1[%c448, %c0_56] : memref<688x128xf32, #tpu.memory_space<vmem>>, vector<16x32xf32>
    %142 = arith.mulf %140, %141 : vector<16x32xf32>
    %c464 = arith.constant 464 : index
    %c0_57 = arith.constant 0 : index
    %143 = vector.load %arg1[%c464, %c0_57] : memref<688x128xf32, #tpu.memory_space<vmem>>, vector<16x32xf32>
    %144 = arith.addf %142, %143 : vector<16x32xf32>
    %c480 = arith.constant 480 : index
    %c0_58 = arith.constant 0 : index
    %145 = vector.load %arg1[%c480, %c0_58] : memref<688x128xf32, #tpu.memory_space<vmem>>, vector<32x64xf32>
    %cst_59 = arith.constant dense<0.000000e+00> : vector<16x64xf32>
    %146 = tpu.matmul %144, %145, %cst_59 {dimension_numbers = #tpu.dot_dimension_numbers<[1], [0], [0], [1], [0, 0, 1, 1], [], []>} : vector<16x32xf32>, vector<32x64xf32>, vector<16x64xf32> -> vector<16x64xf32>
    %c672 = arith.constant 672 : index
    %c0_60 = arith.constant 0 : index
    %147 = vector.load %arg1[%c672, %c0_60] : memref<688x128xf32, #tpu.memory_space<vmem>>, vector<16x64xf32>
    %148 = arith.mulf %146, %147 : vector<16x64xf32>
    %c512 = arith.constant 512 : index
    %c0_61 = arith.constant 0 : index
    %149 = vector.load %arg1[%c512, %c0_61] : memref<688x128xf32, #tpu.memory_space<vmem>>, vector<64x8xf32>
    %cst_62 = arith.constant dense<0.000000e+00> : vector<16x8xf32>
    %150 = tpu.matmul %148, %149, %cst_62 {dimension_numbers = #tpu.dot_dimension_numbers<[1], [0], [0], [1], [0, 0, 1, 1], [], []>} : vector<16x64xf32>, vector<64x8xf32>, vector<16x8xf32> -> vector<16x8xf32>
    %c576 = arith.constant 576 : index
    %c0_63 = arith.constant 0 : index
    %151 = vector.load %arg1[%c576, %c0_63] : memref<688x128xf32, #tpu.memory_space<vmem>>, vector<2x16xf32>
    %cst_64 = arith.constant dense<0.000000e+00> : vector<2x8xf32>
    %152 = tpu.matmul %151, %150, %cst_64 {dimension_numbers = #tpu.dot_dimension_numbers<[1], [0], [0], [1], [0, 0, 1, 1], [], []>} : vector<2x16xf32>, vector<16x8xf32>, vector<2x8xf32> -> vector<2x8xf32>
    %c584 = arith.constant 584 : index
    %c0_65 = arith.constant 0 : index
    %153 = vector.load %arg1[%c584, %c0_65] : memref<688x128xf32, #tpu.memory_space<vmem>>, vector<2x8xf32>
    %154 = arith.addf %152, %153 : vector<2x8xf32>
    %c0_66 = arith.constant 0 : index
    %c0_67 = arith.constant 0 : index
    %155 = vector.load %arg2[%c0_66, %c0_67] : memref<2x8xf32, #tpu.memory_space<vmem>>, vector<2x8xf32>
    tpu.vector_store %arg2[%c0_66, %c0_67], %154 {strides = array<i32>} : memref<2x8xf32, #tpu.memory_space<vmem>>, vector<2x8xf32>,
    return
  }
}

</mosaic_0001>

<llo_original>
// kernel: tpu_custom_call.1
$region0: #{tpu_custom_call.1}
  #allocation0 [shape = 'u32[]', space=smem, size = 0x4, offset = 0x4, fixed_abs, tag = 'smem constant byte address 0x4 - core index']
  #allocation1 [shape = 'u32[144,128]{1,0:T(1,128)}', space=vmem, size = 0x12000, scoped, tag = 'internal scratch']
  %s0 = inlined_call_operand.hbm [shape: f32[16,16], index: 0, kind: input, shape index: {}]
  %s1 = inlined_call_operand.hbm [shape: f32[688,128], index: 1, kind: input, shape index: {}]
  %s2 = inlined_call_operand.hbm [shape: f32[2,8], index: 2, kind: output, shape index: {}]
  %s3 = sld [smem:[#allocation0]]
  $region26: #{tpu_custom_call.1} parent=0
    _
  %s5 = ssub.s32 1, %s3
  %s6 = scalar_select 0, %s5, %s3
  $region1: #{tpu_custom_call.1} parent=0
    #allocation2 [shape = 'u8[8192]{0}', space=vmem, size = 0x2000, scoped, tag = 'input window, operand 0, single buffered']
    #allocation3 [shape = 's32[1]{0}', space=sflag, size = 0x4, scoped, tag = 'scoped memory for tpu_custom_call.1']
    #allocation4 [shape = 's32[1]{0}', space=sflag, size = 0x4, scoped, tag = 'scoped memory for tpu_custom_call.1']
    #allocation5 [shape = 'u8[352256]{0}', space=vmem, size = 0x56000, scoped, tag = 'input window, operand 1, single buffered']
    #allocation6 [shape = 's32[1]{0}', space=sflag, size = 0x4, scoped, tag = 'scoped memory for tpu_custom_call.1']
    #allocation7 [shape = 'u8[1024]{0}', space=vmem, size = 0x400, scoped, tag = 'output window, operand 0, single buffered']
    %7 = vsyncpa [#allocation3], 0
    %8 = vsyncpa [#allocation6], 0
    %9 = vsyncpa [#allocation4], 0
    // Predicated region
    $region2: #{tpu_custom_call.1} parent=1 // pred_check
      _
    $region3: #{tpu_custom_call.1} parent=1 // pred_check_branch
      %11 = sbr.rel (0) target = $region5
    $region4: #{tpu_custom_call.1} parent=1 // pred_region
      %s13 = ssub.s32 256, 256
      %14 = vsyncadd [#allocation3], %s13
      %s15 = sshll.u32 [#allocation2], 4
      %s16 = int_to_ptr.vmem [resolvable:$true] %s15
      %21 = dma.hbm_to_vmem [thread:$0]  %s0, 256, %s16, [#allocation3], 128, 128, 8
    $region5: #{tpu_custom_call.1} parent=1 // pred_fallthru
      _
    // Predicated region
    $region6: #{tpu_custom_call.1} parent=1 // pred_check
      _
    $region7: #{tpu_custom_call.1} parent=1 // pred_check_branch
      %23 = sbr.rel (0) target = $region9
    $region8: #{tpu_custom_call.1} parent=1 // pred_region
      %s25 = ssub.s32 11008, 11008
      %26 = vsyncadd [#allocation6], %s25
      %s27 = sshll.u32 [#allocation5], 4
      %s28 = int_to_ptr.vmem [resolvable:$true] %s27
      %33 = dma.hbm_to_vmem [thread:$0]  %s1, 11008, %s28, [#allocation6], 128, 128, 8
    $region9: #{tpu_custom_call.1} parent=1 // pred_fallthru
      _
    // Predicated region
    $region10: #{tpu_custom_call.1} parent=1 // pred_check
      _
    $region11: #{tpu_custom_call.1} parent=1 // pred_check_branch
      %35 = sbr.rel (0) target = $region13
    $region12: #{tpu_custom_call.1} parent=1 // pred_region
      %36 = dma.done [#allocation3], 256
    $region13: #{tpu_custom_call.1} parent=1 // pred_fallthru
      _
    // Predicated region
    $region14: #{tpu_custom_call.1} parent=1 // pred_check
      _
    $region15: #{tpu_custom_call.1} parent=1 // pred_check_branch
      %38 = sbr.rel (0) target = $region17
    $region16: #{tpu_custom_call.1} parent=1 // pred_region
      %39 = dma.done [#allocation6], 11008
    $region17: #{tpu_custom_call.1} parent=1 // pred_fallthru
      _
    %v40 = vld [vmem:[#allocation2] sm:$0xff]
    %v41 = vld [vmem:[#allocation2 + $0x8] sm:$0xff]
    %v42 = vld [vmem:[#allocation5] sm:$0xff]
    %v43 = vld [vmem:[#allocation5 + $0x8] sm:$0xff]
    %v44 = vld [vmem:[#allocation5 + $0x10] sm:$0xff]
    %v45 = vld [vmem:[#allocation5 + $0x18] sm:$0xff]
    %vm46 = vcmask 130048
    %v48 = vsel %vm46, %v40, 0
    %v51 = vsel %vm46, %v41, 0
    %53 = vmatprep.subr.mxu0 0.0
    %54 = vmatpush1.msra.mxu0 %v42
    %55 = vmatprep.subr.mxu0 0.0
    %56 = vmatpush1.msra.mxu0 %v43
    %57 = vmatprep.subr.mxu0 0.0
    %58 = vmatpush1.msra.mxu0 0.0
    %59 = vmatprep.subr.mxu0 0.0
    %60 = vmatpush1.msra.mxu0 0.0
    %61 = vmatprep.subr.mxu0 0.0
    %62 = vmatpush1.msra.mxu0 0.0
    %63 = vmatprep.subr.mxu0 0.0
    %64 = vmatpush1.msra.mxu0 0.0
    %65 = vmatprep.subr.mxu0 0.0
    %66 = vmatpush1.msra.mxu0 0.0
    %67 = vmatprep.subr.mxu0 0.0
    %68 = vmatpush1.msra.mxu0 0.0
    %69 = vmatprep.subr.mxu0 0.0
    %70 = vmatpush1.msra.mxu0 0.0
    %71 = vmatprep.subr.mxu0 0.0
    %72 = vmatpush1.msra.mxu0 0.0
    %73 = vmatprep.subr.mxu0 0.0
    %74 = vmatpush1.msra.mxu0 0.0
    %75 = vmatprep.subr.mxu0 0.0
    %76 = vmatpush1.msra.mxu0 0.0
    %77 = vmatprep.subr.mxu0 0.0
    %78 = vmatpush1.msra.mxu0 0.0
    %79 = vmatprep.subr.mxu0 0.0
    %80 = vmatpush1.msra.mxu0 0.0
    %81 = vmatprep.subr.mxu0 0.0
    %82 = vmatpush1.msra.mxu0 0.0
    %83 = vmatprep.subr.mxu0 0.0
    %84 = vmatpush1.msra.mxu0 0.0
    %85 = vmatprep.subr.mxu0 0.0
    %86 = vmatpush1.msra.mxu0 0.0
    %87 = vmatprep.subr.mxu0 0.0
    %88 = vmatpush1.msra.mxu0 0.0
    %89 = vmatprep.subr.mxu0 0.0
    %90 = vmatpush1.msra.mxu0 0.0
    %91 = vmatprep.subr.mxu0 0.0
    %92 = vmatpush1.msra.mxu0 0.0
    %93 = vmatprep.subr.mxu0 0.0
    %94 = vmatpush1.msra.mxu0 0.0
    %95 = vmatprep.subr.mxu0 0.0
    %96 = vmatpush1.msra.mxu0 0.0
    %97 = vmatprep.subr.mxu0 0.0
    %98 = vmatpush1.msra.mxu0 0.0
    %99 = vmatprep.subr.mxu0 0.0
    %100 = vmatpush1.msra.mxu0 0.0
    %101 = vmatprep.subr.mxu0 0.0
    %102 = vmatpush1.msra.mxu0 0.0
    %103 = vmatprep.subr.mxu0 0.0
    %104 = vmatpush1.msra.mxu0 0.0
    %105 = vmatprep.subr.mxu0 0.0
    %106 = vmatpush1.msra.mxu0 0.0
    %107 = vmatprep.subr.mxu0 0.0
    %108 = vmatpush1.msra.mxu0 0.0
    %109 = vmatprep.subr.mxu0 0.0
    %110 = vmatpush1.msra.mxu0 0.0
    %111 = vmatprep.subr.mxu0 0.0
    %112 = vmatpush1.msra.mxu0 0.0
    %113 = vmatprep.subr.mxu0 0.0
    %114 = vmatpush1.msra.mxu0 0.0
    %115 = vmatprep.subr.mxu0 0.0
    %116 = vmatpush1.msra.mxu0 0.0
    %117 = vmatprep.mubr.f32.mxu0 0.0
    %118 = vmatmul.mubr.f32.gmra.mrb[0].mxu0 %v48
    %v119 = vpop.f32.mrb[0].mxu0
    %v120 = vadd.f32 %v44, %v119
    %v121 = vpop.f32.mrb[0].mxu0
    %122 = vmatprep.mubr.f32.mxu0 0.0
    %123 = vmatmul.mubr.f32.gmra.mrb[0].mxu0 %v51
    %v124 = vpop.f32.mrb[0].mxu0
    %v125 = vadd.f32 %v45, %v124
    %v126 = vpop.f32.mrb[0].mxu0
    %127 = vdwg.mxu0
    %v128 = vld [vmem:[#allocation5 + $0x20] sm:$0xff]
    %v129 = vld [vmem:[#allocation5 + $0x28] sm:$0xff]
    %v130 = vld [vmem:[#allocation5 + $0x30] sm:$0xff]
    %v131 = vld [vmem:[#allocation5 + $0x38] sm:$0xff]
    %v132 = vld [vmem:[#allocation5 + $0x80] sm:$0xff]
    %v133 = vld [vmem:[#allocation5 + $0x88] sm:$0xff]
    %vm134 = vcmask 261120
    %v136 = vsel %vm134, %v120, 0
    %v139 = vsel %vm134, %v125, 0
    %141 = vmatprep.subr.mxu0 0.0
    %142 = vmatpush1.msra.mxu0 %v128
    %143 = vmatprep.subr.mxu0 0.0
    %144 = vmatpush1.msra.mxu0 %v129
    %145 = vmatprep.subr.mxu0 0.0
    %146 = vmatpush1.msra.mxu0 %v130
    %147 = vmatprep.subr.mxu0 0.0
    %148 = vmatpush1.msra.mxu0 %v131
    %149 = vmatprep.subr.mxu0 0.0
    %150 = vmatpush1.msra.mxu0 0.0
    %151 = vmatprep.subr.mxu0 0.0
    %152 = vmatpush1.msra.mxu0 0.0
    %153 = vmatprep.subr.mxu0 0.0
    %154 = vmatpush1.msra.mxu0 0.0
    %155 = vmatprep.subr.mxu0 0.0
    %156 = vmatpush1.msra.mxu0 0.0
    %157 = vmatprep.subr.mxu0 0.0
    %158 = vmatpush1.msra.mxu0 0.0
    %159 = vmatprep.subr.mxu0 0.0
    %160 = vmatpush1.msra.mxu0 0.0
    %161 = vmatprep.subr.mxu0 0.0
    %162 = vmatpush1.msra.mxu0 0.0
    %163 = vmatprep.subr.mxu0 0.0
    %164 = vmatpush1.msra.mxu0 0.0
    %165 = vmatprep.subr.mxu0 0.0
    %166 = vmatpush1.msra.mxu0 0.0
    %167 = vmatprep.subr.mxu0 0.0
    %168 = vmatpush1.msra.mxu0 0.0
    %169 = vmatprep.subr.mxu0 0.0
    %170 = vmatpush1.msra.mxu0 0.0
    %171 = vmatprep.subr.mxu0 0.0
    %172 = vmatpush1.msra.mxu0 0.0
    %173 = vmatprep.subr.mxu0 0.0
    %174 = vmatpush1.msra.mxu0 0.0
    %175 = vmatprep.subr.mxu0 0.0
    %176 = vmatpush1.msra.mxu0 0.0
    %177 = vmatprep.subr.mxu0 0.0
    %178 = vmatpush1.msra.mxu0 0.0
    %179 = vmatprep.subr.mxu0 0.0
    %180 = vmatpush1.msra.mxu0 0.0
    %181 = vmatprep.subr.mxu0 0.0
    %182 = vmatpush1.msra.mxu0 0.0
    %183 = vmatprep.subr.mxu0 0.0
    %184 = vmatpush1.msra.mxu0 0.0
    %185 = vmatprep.subr.mxu0 0.0
    %186 = vmatpush1.msra.mxu0 0.0
    %187 = vmatprep.subr.mxu0 0.0
    %188 = vmatpush1.msra.mxu0 0.0
    %189 = vmatprep.subr.mxu0 0.0
    %190 = vmatpush1.msra.mxu0 0.0
    %191 = vmatprep.subr.mxu0 0.0
    %192 = vmatpush1.msra.mxu0 0.0
    %193 = vmatprep.subr.mxu0 0.0
    %194 = vmatpush1.msra.mxu0 0.0
    %195 = vmatprep.subr.mxu0 0.0
    %196 = vmatpush1.msra.mxu0 0.0
    %197 = vmatprep.subr.mxu0 0.0
    %198 = vmatpush1.msra.mxu0 0.0
    %199 = vmatprep.subr.mxu0 0.0
    %200 = vmatpush1.msra.mxu0 0.0
    %201 = vmatprep.subr.mxu0 0.0
    %202 = vmatpush1.msra.mxu0 0.0
    %203 = vmatprep.subr.mxu0 0.0
    %204 = vmatpush1.msra.mxu0 0.0
    %205 = vmatprep.mubr.f32.mxu0 0.0
    %206 = vmatmul.mubr.f32.gmra.mrb[0].mxu0 %v136
    %v207 = vpop.f32.mrb[0].mxu0
    %v208 = vadd.f32 %v132, %v207
    %v209 = vpop.f32.mrb[0].mxu0
    %210 = vmatprep.mubr.f32.mxu0 0.0
    %211 = vmatmul.mubr.f32.gmra.mrb[0].mxu0 %v139
    %v212 = vpop.f32.mrb[0].mxu0
    %v213 = vadd.f32 %v133, %v212
    %v214 = vpop.f32.mrb[0].mxu0
    %215 = vdwg.mxu0
    %v216 = vld [vmem:[#allocation5 + $0x40] sm:$0xff]
    %v217 = vld [vmem:[#allocation5 + $0x48] sm:$0xff]
    %v218 = vld [vmem:[#allocation5 + $0x50] sm:$0xff]
    %v219 = vld [vmem:[#allocation5 + $0x58] sm:$0xff]
    %v220 = vld [vmem:[#allocation5 + $0x90] sm:$0xff]
    %v221 = vld [vmem:[#allocation5 + $0x98] sm:$0xff]
    %222 = vmatprep.subr.mxu0 0.0
    %223 = vmatpush1.msra.mxu0 %v216
    %224 = vmatprep.subr.mxu0 0.0
    %225 = vmatpush1.msra.mxu0 %v217
    %226 = vmatprep.subr.mxu0 0.0
    %227 = vmatpush1.msra.mxu0 %v218
    %228 = vmatprep.subr.mxu0 0.0
    %229 = vmatpush1.msra.mxu0 %v219
    %230 = vmatprep.subr.mxu0 0.0
    %231 = vmatpush1.msra.mxu0 0.0
    %232 = vmatprep.subr.mxu0 0.0
    %233 = vmatpush1.msra.mxu0 0.0
    %234 = vmatprep.subr.mxu0 0.0
    %235 = vmatpush1.msra.mxu0 0.0
    %236 = vmatprep.subr.mxu0 0.0
    %237 = vmatpush1.msra.mxu0 0.0
    %238 = vmatprep.subr.mxu0 0.0
    %239 = vmatpush1.msra.mxu0 0.0
    %240 = vmatprep.subr.mxu0 0.0
    %241 = vmatpush1.msra.mxu0 0.0
    %242 = vmatprep.subr.mxu0 0.0
    %243 = vmatpush1.msra.mxu0 0.0
    %244 = vmatprep.subr.mxu0 0.0
    %245 = vmatpush1.msra.mxu0 0.0
    %246 = vmatprep.subr.mxu0 0.0
    %247 = vmatpush1.msra.mxu0 0.0
    %248 = vmatprep.subr.mxu0 0.0
    %249 = vmatpush1.msra.mxu0 0.0
    %250 = vmatprep.subr.mxu0 0.0
    %251 = vmatpush1.msra.mxu0 0.0
    %252 = vmatprep.subr.mxu0 0.0
    %253 = vmatpush1.msra.mxu0 0.0
    %254 = vmatprep.subr.mxu0 0.0
    %255 = vmatpush1.msra.mxu0 0.0
    %256 = vmatprep.subr.mxu0 0.0
    %257 = vmatpush1.msra.mxu0 0.0
    %258 = vmatprep.subr.mxu0 0.0
    %259 = vmatpush1.msra.mxu0 0.0
    %260 = vmatprep.subr.mxu0 0.0
    %261 = vmatpush1.msra.mxu0 0.0
    %262 = vmatprep.subr.mxu0 0.0
    %263 = vmatpush1.msra.mxu0 0.0
    %264 = vmatprep.subr.mxu0 0.0
    %265 = vmatpush1.msra.mxu0 0.0
    %266 = vmatprep.subr.mxu0 0.0
    %267 = vmatpush1.msra.mxu0 0.0
    %268 = vmatprep.subr.mxu0 0.0
    %269 = vmatpush1.msra.mxu0 0.0
    %270 = vmatprep.subr.mxu0 0.0
    %271 = vmatpush1.msra.mxu0 0.0
    %272 = vmatprep.subr.mxu0 0.0
    %273 = vmatpush1.msra.mxu0 0.0
    %274 = vmatprep.subr.mxu0 0.0
    %275 = vmatpush1.msra.mxu0 0.0
    %276 = vmatprep.subr.mxu0 0.0
    %277 = vmatpush1.msra.mxu0 0.0
    %278 = vmatprep.subr.mxu0 0.0
    %279 = vmatpush1.msra.mxu0 0.0
    %280 = vmatprep.subr.mxu0 0.0
    %281 = vmatpush1.msra.mxu0 0.0
    %282 = vmatprep.subr.mxu0 0.0
    %283 = vmatpush1.msra.mxu0 0.0
    %284 = vmatprep.subr.mxu0 0.0
    %285 = vmatpush1.msra.mxu0 0.0
    %286 = vmatprep.mubr.f32.mxu0 0.0
    %287 = vmatmul.mubr.f32.gmra.mrb[0].mxu0 %v136
    %v288 = vpop.f32.mrb[0].mxu0
    %v289 = vadd.f32 %v220, %v288
    %v290 = vpop.f32.mrb[0].mxu0
    %291 = vmatprep.mubr.f32.mxu0 0.0
    %292 = vmatmul.mubr.f32.gmra.mrb[0].mxu0 %v139
    %v293 = vpop.f32.mrb[0].mxu0
    %v294 = vadd.f32 %v221, %v293
    %v295 = vpop.f32.mrb[0].mxu0
    %296 = vdwg.mxu0
    %v297 = vld [vmem:[#allocation5 + $0x60] sm:$0xff]
    %v298 = vld [vmem:[#allocation5 + $0x68] sm:$0xff]
    %v299 = vld [vmem:[#allocation5 + $0x70] sm:$0xff]
    %v300 = vld [vmem:[#allocation5 + $0x78] sm:$0xff]
    %v301 = vld [vmem:[#allocation5 + $0xa0] sm:$0xff]
    %v302 = vld [vmem:[#allocation5 + $0xa8] sm:$0xff]
    %303 = vmatprep.subr.mxu0 0.0
    %304 = vmatpush1.msra.mxu0 %v297
    %305 = vmatprep.subr.mxu0 0.0
    %306 = vmatpush1.msra.mxu0 %v298
    %307 = vmatprep.subr.mxu0 0.0
    %308 = vmatpush1.msra.mxu0 %v299
    %309 = vmatprep.subr.mxu0 0.0
    %310 = vmatpush1.msra.mxu0 %v300
    %311 = vmatprep.subr.mxu0 0.0
    %312 = vmatpush1.msra.mxu0 0.0
    %313 = vmatprep.subr.mxu0 0.0
    %314 = vmatpush1.msra.mxu0 0.0
    %315 = vmatprep.subr.mxu0 0.0
    %316 = vmatpush1.msra.mxu0 0.0
    %317 = vmatprep.subr.mxu0 0.0
    %318 = vmatpush1.msra.mxu0 0.0
    %319 = vmatprep.subr.mxu0 0.0
    %320 = vmatpush1.msra.mxu0 0.0
    %321 = vmatprep.subr.mxu0 0.0
    %322 = vmatpush1.msra.mxu0 0.0
    %323 = vmatprep.subr.mxu0 0.0
    %324 = vmatpush1.msra.mxu0 0.0
    %325 = vmatprep.subr.mxu0 0.0
    %326 = vmatpush1.msra.mxu0 0.0
    %327 = vmatprep.subr.mxu0 0.0
    %328 = vmatpush1.msra.mxu0 0.0
    %329 = vmatprep.subr.mxu0 0.0
    %330 = vmatpush1.msra.mxu0 0.0
    %331 = vmatprep.subr.mxu0 0.0
    %332 = vmatpush1.msra.mxu0 0.0
    %333 = vmatprep.subr.mxu0 0.0
    %334 = vmatpush1.msra.mxu0 0.0
    %335 = vmatprep.subr.mxu0 0.0
    %336 = vmatpush1.msra.mxu0 0.0
    %337 = vmatprep.subr.mxu0 0.0
    %338 = vmatpush1.msra.mxu0 0.0
    %339 = vmatprep.subr.mxu0 0.0
    %340 = vmatpush1.msra.mxu0 0.0
    %341 = vmatprep.subr.mxu0 0.0
    %342 = vmatpush1.msra.mxu0 0.0
    %343 = vmatprep.subr.mxu0 0.0
    %344 = vmatpush1.msra.mxu0 0.0
    %345 = vmatprep.subr.mxu0 0.0
    %346 = vmatpush1.msra.mxu0 0.0
    %347 = vmatprep.subr.mxu0 0.0
    %348 = vmatpush1.msra.mxu0 0.0
    %349 = vmatprep.subr.mxu0 0.0
    %350 = vmatpush1.msra.mxu0 0.0
    %351 = vmatprep.subr.mxu0 0.0
    %352 = vmatpush1.msra.mxu0 0.0
    %353 = vmatprep.subr.mxu0 0.0
    %354 = vmatpush1.msra.mxu0 0.0
    %355 = vmatprep.subr.mxu0 0.0
    %356 = vmatpush1.msra.mxu0 0.0
    %357 = vmatprep.subr.mxu0 0.0
    %358 = vmatpush1.msra.mxu0 0.0
    %359 = vmatprep.subr.mxu0 0.0
    %360 = vmatpush1.msra.mxu0 0.0
    %361 = vmatprep.subr.mxu0 0.0
    %362 = vmatpush1.msra.mxu0 0.0
    %363 = vmatprep.subr.mxu0 0.0
    %364 = vmatpush1.msra.mxu0 0.0
    %365 = vmatprep.subr.mxu0 0.0
    %366 = vmatpush1.msra.mxu0 0.0
    %367 = vmatprep.mubr.f32.mxu0 0.0
    %368 = vmatmul.mubr.f32.gmra.mrb[0].mxu0 %v136
    %v369 = vpop.f32.mrb[0].mxu0
    %v370 = vadd.f32 %v301, %v369
    %v371 = vpop.f32.mrb[0].mxu0
    %372 = vmatprep.mubr.f32.mxu0 0.0
    %373 = vmatmul.mubr.f32.gmra.mrb[0].mxu0 %v139
    %v374 = vpop.f32.mrb[0].mxu0
    %v375 = vadd.f32 %v302, %v374
    %v376 = vpop.f32.mrb[0].mxu0
    %377 = vdwg.mxu0
    %v378 = vld [vmem:[#allocation5 + $0x290] sm:$0xff]
    %v379 = vld [vmem:[#allocation5 + $0x298] sm:$0xff]
    %v380 = vld [vmem:[#allocation5 + $0x250] sm:$0xff]
    %v381 = vld [vmem:[#allocation5 + $0x258] sm:$0xff]
    %v382 = vmul.f32 %v208, %v380
    %v383 = vmul.f32 %v213, %v381
    %v385 = vsel %vm134, %v382, 0
    %v388 = vsel %vm134, %v383, 0
    %v391 = vsel %vm134, %v289, 0
    %v394 = vsel %vm134, %v294, 0
    %396 = vmatprep.subr.mxu0 0.0
    %397 = vmatpush1.xpose.msra.mxu0 %v391
    %398 = vmatprep.subr.mxu0 0.0
    %399 = vmatpush1.xpose.msra.mxu0 %v394
    %400 = vmatprep.subr.mxu0 0.0
    %401 = vmatpush1.xpose.msra.mxu0 0.0
    %402 = vmatprep.subr.mxu0 0.0
    %403 = vmatpush1.xpose.msra.mxu0 0.0
    %404 = vmatprep.subr.mxu0 0.0
    %405 = vmatpush1.xpose.msra.mxu0 0.0
    %406 = vmatprep.subr.mxu0 0.0
    %407 = vmatpush1.xpose.msra.mxu0 0.0
    %408 = vmatprep.subr.mxu0 0.0
    %409 = vmatpush1.xpose.msra.mxu0 0.0
    %410 = vmatprep.subr.mxu0 0.0
    %411 = vmatpush1.xpose.msra.mxu0 0.0
    %412 = vmatprep.subr.mxu0 0.0
    %413 = vmatpush1.xpose.msra.mxu0 0.0
    %414 = vmatprep.subr.mxu0 0.0
    %415 = vmatpush1.xpose.msra.mxu0 0.0
    %416 = vmatprep.subr.mxu0 0.0
    %417 = vmatpush1.xpose.msra.mxu0 0.0
    %418 = vmatprep.subr.mxu0 0.0
    %419 = vmatpush1.xpose.msra.mxu0 0.0
    %420 = vmatprep.subr.mxu0 0.0
    %421 = vmatpush1.xpose.msra.mxu0 0.0
    %422 = vmatprep.subr.mxu0 0.0
    %423 = vmatpush1.xpose.msra.mxu0 0.0
    %424 = vmatprep.subr.mxu0 0.0
    %425 = vmatpush1.xpose.msra.mxu0 0.0
    %426 = vmatprep.subr.mxu0 0.0
    %427 = vmatpush1.xpose.msra.mxu0 0.0
    %428 = vmatprep.subr.mxu0 0.0
    %429 = vmatpush1.xpose.msra.mxu0 0.0
    %430 = vmatprep.subr.mxu0 0.0
    %431 = vmatpush1.xpose.msra.mxu0 0.0
    %432 = vmatprep.subr.mxu0 0.0
    %433 = vmatpush1.xpose.msra.mxu0 0.0
    %434 = vmatprep.subr.mxu0 0.0
    %435 = vmatpush1.xpose.msra.mxu0 0.0
    %436 = vmatprep.subr.mxu0 0.0
    %437 = vmatpush1.xpose.msra.mxu0 0.0
    %438 = vmatprep.subr.mxu0 0.0
    %439 = vmatpush1.xpose.msra.mxu0 0.0
    %440 = vmatprep.subr.mxu0 0.0
    %441 = vmatpush1.xpose.msra.mxu0 0.0
    %442 = vmatprep.subr.mxu0 0.0
    %443 = vmatpush1.xpose.msra.mxu0 0.0
    %444 = vmatprep.subr.mxu0 0.0
    %445 = vmatpush1.xpose.msra.mxu0 0.0
    %446 = vmatprep.subr.mxu0 0.0
    %447 = vmatpush1.xpose.msra.mxu0 0.0
    %448 = vmatprep.subr.mxu0 0.0
    %449 = vmatpush1.xpose.msra.mxu0 0.0
    %450 = vmatprep.subr.mxu0 0.0
    %451 = vmatpush1.xpose.msra.mxu0 0.0
    %452 = vmatprep.subr.mxu0 0.0
    %453 = vmatpush1.xpose.msra.mxu0 0.0
    %454 = vmatprep.subr.mxu0 0.0
    %455 = vmatpush1.xpose.msra.mxu0 0.0
    %456 = vmatprep.subr.mxu0 0.0
    %457 = vmatpush1.xpose.msra.mxu0 0.0
    %458 = vmatprep.subr.mxu0 0.0
    %459 = vmatpush1.xpose.msra.mxu0 0.0
    %460 = vmatprep.mubr.f32.mxu0 0.0
    %461 = vmatmul.mubr.f32.gmra.mrb[0].mxu0 %v385
    %v462 = vpop.f32.mrb[0].mxu0
    %v463 = vadd.f32 %v378, %v462
    %v464 = vpop.f32.mrb[0].mxu0
    %465 = vmatprep.mubr.f32.mxu0 0.0
    %466 = vmatmul.mubr.f32.gmra.mrb[0].mxu0 %v388
    %v467 = vpop.f32.mrb[0].mxu0
    %v468 = vadd.f32 %v379, %v467
    %v469 = vpop.f32.mrb[0].mxu0
    %470 = vdwg.mxu0
    %v471 = vsel %vm46, %v463, -inf
    %472 = vmax.xlane.f32.xlu0 %v471
    %v473 = vpop.xlane.xlu0 %472
    %v474 = vsel %vm46, %v468, -inf
    %475 = vmax.xlane.f32.xlu0 %v474
    %v476 = vpop.xlane.xlu0 %475
    %v477 = vsub.f32 %v463, %v473
    %v478 = vsub.f32 %v468, %v476
    %v479 = vmul.f32 %v477, 1.442695
    %v480 = vpow.pop %v479
    %v481 = vmul.f32 %v478, 1.442695
    %v482 = vpow.pop %v481
    %v483 = vsel %vm46, %v480, 0.0
    %484 = vadd.xlane.f32.xlu0 %v483
    %v485 = vpop.xlane.xlu0 %484
    %v486 = vsel %vm46, %v482, 0.0
    %487 = vadd.xlane.f32.xlu0 %v486
    %v488 = vpop.xlane.xlu0 %487
    %v489 = vrcp.pop %v485
    %v490 = vrcp.pop %v488
    %v491 = vmul.f32 %v480, %v489
    %v492 = vmul.f32 %v482, %v490
    %v493 = vmul.f32 %v370, %v380
    %v494 = vmul.f32 %v375, %v381
    %v495 = vld [vmem:[#allocation5 + $0x260] sm:$0xff]
    %v496 = vld [vmem:[#allocation5 + $0x268] sm:$0xff]
    %v497 = vmul.f32 %v208, %v495
    %v498 = vmul.f32 %v213, %v496
    %v500 = vsel %vm134, %v497, 0
    %v503 = vsel %vm134, %v498, 0
    %505 = vmatprep.subr.mxu0 0.0
    %506 = vmatpush1.xpose.msra.mxu0 %v391
    %507 = vmatprep.subr.mxu0 0.0
    %508 = vmatpush1.xpose.msra.mxu0 %v394
    %509 = vmatprep.subr.mxu0 0.0
    %510 = vmatpush1.xpose.msra.mxu0 0.0
    %511 = vmatprep.subr.mxu0 0.0
    %512 = vmatpush1.xpose.msra.mxu0 0.0
    %513 = vmatprep.subr.mxu0 0.0
    %514 = vmatpush1.xpose.msra.mxu0 0.0
    %515 = vmatprep.subr.mxu0 0.0
    %516 = vmatpush1.xpose.msra.mxu0 0.0
    %517 = vmatprep.subr.mxu0 0.0
    %518 = vmatpush1.xpose.msra.mxu0 0.0
    %519 = vmatprep.subr.mxu0 0.0
    %520 = vmatpush1.xpose.msra.mxu0 0.0
    %521 = vmatprep.subr.mxu0 0.0
    %522 = vmatpush1.xpose.msra.mxu0 0.0
    %523 = vmatprep.subr.mxu0 0.0
    %524 = vmatpush1.xpose.msra.mxu0 0.0
    %525 = vmatprep.subr.mxu0 0.0
    %526 = vmatpush1.xpose.msra.mxu0 0.0
    %527 = vmatprep.subr.mxu0 0.0
    %528 = vmatpush1.xpose.msra.mxu0 0.0
    %529 = vmatprep.subr.mxu0 0.0
    %530 = vmatpush1.xpose.msra.mxu0 0.0
    %531 = vmatprep.subr.mxu0 0.0
    %532 = vmatpush1.xpose.msra.mxu0 0.0
    %533 = vmatprep.subr.mxu0 0.0
    %534 = vmatpush1.xpose.msra.mxu0 0.0
    %535 = vmatprep.subr.mxu0 0.0
    %536 = vmatpush1.xpose.msra.mxu0 0.0
    %537 = vmatprep.subr.mxu0 0.0
    %538 = vmatpush1.xpose.msra.mxu0 0.0
    %539 = vmatprep.subr.mxu0 0.0
    %540 = vmatpush1.xpose.msra.mxu0 0.0
    %541 = vmatprep.subr.mxu0 0.0
    %542 = vmatpush1.xpose.msra.mxu0 0.0
    %543 = vmatprep.subr.mxu0 0.0
    %544 = vmatpush1.xpose.msra.mxu0 0.0
    %545 = vmatprep.subr.mxu0 0.0
    %546 = vmatpush1.xpose.msra.mxu0 0.0
    %547 = vmatprep.subr.mxu0 0.0
    %548 = vmatpush1.xpose.msra.mxu0 0.0
    %549 = vmatprep.subr.mxu0 0.0
    %550 = vmatpush1.xpose.msra.mxu0 0.0
    %551 = vmatprep.subr.mxu0 0.0
    %552 = vmatpush1.xpose.msra.mxu0 0.0
    %553 = vmatprep.subr.mxu0 0.0
    %554 = vmatpush1.xpose.msra.mxu0 0.0
    %555 = vmatprep.subr.mxu0 0.0
    %556 = vmatpush1.xpose.msra.mxu0 0.0
    %557 = vmatprep.subr.mxu0 0.0
    %558 = vmatpush1.xpose.msra.mxu0 0.0
    %559 = vmatprep.subr.mxu0 0.0
    %560 = vmatpush1.xpose.msra.mxu0 0.0
    %561 = vmatprep.subr.mxu0 0.0
    %562 = vmatpush1.xpose.msra.mxu0 0.0
    %563 = vmatprep.subr.mxu0 0.0
    %564 = vmatpush1.xpose.msra.mxu0 0.0
    %565 = vmatprep.subr.mxu0 0.0
    %566 = vmatpush1.xpose.msra.mxu0 0.0
    %567 = vmatprep.subr.mxu0 0.0
    %568 = vmatpush1.xpose.msra.mxu0 0.0
    %569 = vmatprep.mubr.f32.mxu0 0.0
    %570 = vmatmul.mubr.f32.gmra.mrb[0].mxu0 %v500
    %v571 = vpop.f32.mrb[0].mxu0
    %v572 = vadd.f32 %v378, %v571
    %v573 = vpop.f32.mrb[0].mxu0
    %574 = vmatprep.mubr.f32.mxu0 0.0
    %575 = vmatmul.mubr.f32.gmra.mrb[0].mxu0 %v503
    %v576 = vpop.f32.mrb[0].mxu0
    %v577 = vadd.f32 %v379, %v576
    %v578 = vpop.f32.mrb[0].mxu0
    %579 = vdwg.mxu0
    %v580 = vsel %vm46, %v572, -inf
    %581 = vmax.xlane.f32.xlu0 %v580
    %v582 = vpop.xlane.xlu0 %581
    %v583 = vsel %vm46, %v577, -inf
    %584 = vmax.xlane.f32.xlu0 %v583
    %v585 = vpop.xlane.xlu0 %584
    %v586 = vsub.f32 %v572, %v582
    %v587 = vsub.f32 %v577, %v585
    %v588 = vmul.f32 %v586, 1.442695
    %v589 = vpow.pop %v588
    %v590 = vmul.f32 %v587, 1.442695
    %v591 = vpow.pop %v590
    %v592 = vsel %vm46, %v589, 0.0
    %593 = vadd.xlane.f32.xlu0 %v592
    %v594 = vpop.xlane.xlu0 %593
    %v595 = vsel %vm46, %v591, 0.0
    %596 = vadd.xlane.f32.xlu0 %v595
    %v597 = vpop.xlane.xlu0 %596
    %v598 = vrcp.pop %v594
    %v599 = vrcp.pop %v597
    %v600 = vmul.f32 %v589, %v598
    %v601 = vmul.f32 %v591, %v599
    %v602 = vmul.f32 %v370, %v495
    %v603 = vmul.f32 %v375, %v496
    %v605 = vsel %vm46, %v600, 0
    %v608 = vsel %vm46, %v601, 0
    %610 = vmatprep.subr.mxu0 0.0
    %611 = vmatpush1.msra.mxu0 %v602
    %612 = vmatprep.subr.mxu0 0.0
    %613 = vmatpush1.msra.mxu0 %v603
    %614 = vmatprep.subr.mxu0 0.0
    %615 = vmatpush1.msra.mxu0 0.0
    %616 = vmatprep.subr.mxu0 0.0
    %617 = vmatpush1.msra.mxu0 0.0
    %618 = vmatprep.subr.mxu0 0.0
    %619 = vmatpush1.msra.mxu0 0.0
    %620 = vmatprep.subr.mxu0 0.0
    %621 = vmatpush1.msra.mxu0 0.0
    %622 = vmatprep.subr.mxu0 0.0
    %623 = vmatpush1.msra.mxu0 0.0
    %624 = vmatprep.subr.mxu0 0.0
    %625 = vmatpush1.msra.mxu0 0.0
    %626 = vmatprep.subr.mxu0 0.0
    %627 = vmatpush1.msra.mxu0 0.0
    %628 = vmatprep.subr.mxu0 0.0
    %629 = vmatpush1.msra.mxu0 0.0
    %630 = vmatprep.subr.mxu0 0.0
    %631 = vmatpush1.msra.mxu0 0.0
    %632 = vmatprep.subr.mxu0 0.0
    %633 = vmatpush1.msra.mxu0 0.0
    %634 = vmatprep.subr.mxu0 0.0
    %635 = vmatpush1.msra.mxu0 0.0
    %636 = vmatprep.subr.mxu0 0.0
    %637 = vmatpush1.msra.mxu0 0.0
    %638 = vmatprep.subr.mxu0 0.0
    %639 = vmatpush1.msra.mxu0 0.0
    %640 = vmatprep.subr.mxu0 0.0
    %641 = vmatpush1.msra.mxu0 0.0
    %642 = vmatprep.subr.mxu0 0.0
    %643 = vmatpush1.msra.mxu0 0.0
    %644 = vmatprep.subr.mxu0 0.0
    %645 = vmatpush1.msra.mxu0 0.0
    %646 = vmatprep.subr.mxu0 0.0
    %647 = vmatpush1.msra.mxu0 0.0
    %648 = vmatprep.subr.mxu0 0.0
    %649 = vmatpush1.msra.mxu0 0.0
    %650 = vmatprep.subr.mxu0 0.0
    %651 = vmatpush1.msra.mxu0 0.0
    %652 = vmatprep.subr.mxu0 0.0
    %653 = vmatpush1.msra.mxu0 0.0
    %654 = vmatprep.subr.mxu0 0.0
    %655 = vmatpush1.msra.mxu0 0.0
    %656 = vmatprep.subr.mxu0 0.0
    %657 = vmatpush1.msra.mxu0 0.0
    %658 = vmatprep.subr.mxu0 0.0
    %659 = vmatpush1.msra.mxu0 0.0
    %660 = vmatprep.subr.mxu0 0.0
    %661 = vmatpush1.msra.mxu0 0.0
    %662 = vmatprep.subr.mxu0 0.0
    %663 = vmatpush1.msra.mxu0 0.0
    %664 = vmatprep.subr.mxu0 0.0
    %665 = vmatpush1.msra.mxu0 0.0
    %666 = vmatprep.subr.mxu0 0.0
    %667 = vmatpush1.msra.mxu0 0.0
    %668 = vmatprep.subr.mxu0 0.0
    %669 = vmatpush1.msra.mxu0 0.0
    %670 = vmatprep.subr.mxu0 0.0
    %671 = vmatpush1.msra.mxu0 0.0
    %672 = vmatprep.subr.mxu0 0.0
    %673 = vmatpush1.msra.mxu0 0.0
    %674 = vmatprep.mubr.f32.mxu0 0.0
    %675 = vmatmul.mubr.f32.gmra.mrb[0].mxu0 %v605
    %v676 = vpop.f32.mrb[0].mxu0
    %v677 = vadd.f32 0.0, %v676
    %v678 = vpop.f32.mrb[0].mxu0
    %679 = vmatprep.mubr.f32.mxu0 0.0
    %680 = vmatmul.mubr.f32.gmra.mrb[0].mxu0 %v608
    %v681 = vpop.f32.mrb[0].mxu0
    %v682 = vadd.f32 0.0, %v681
    %v683 = vpop.f32.mrb[0].mxu0
    %684 = vdwg.mxu0
    %v686 = vsel %vm46, %v491, 0
    %v689 = vsel %vm46, %v492, 0
    %691 = vmatprep.subr.mxu0 0.0
    %692 = vmatpush1.msra.mxu0 %v493
    %693 = vmatprep.subr.mxu0 0.0
    %694 = vmatpush1.msra.mxu0 %v494
    %695 = vmatprep.subr.mxu0 0.0
    %696 = vmatpush1.msra.mxu0 0.0
    %697 = vmatprep.subr.mxu0 0.0
    %698 = vmatpush1.msra.mxu0 0.0
    %699 = vmatprep.subr.mxu0 0.0
    %700 = vmatpush1.msra.mxu0 0.0
    %701 = vmatprep.subr.mxu0 0.0
    %702 = vmatpush1.msra.mxu0 0.0
    %703 = vmatprep.subr.mxu0 0.0
    %704 = vmatpush1.msra.mxu0 0.0
    %705 = vmatprep.subr.mxu0 0.0
    %706 = vmatpush1.msra.mxu0 0.0
    %707 = vmatprep.subr.mxu0 0.0
    %708 = vmatpush1.msra.mxu0 0.0
    %709 = vmatprep.subr.mxu0 0.0
    %710 = vmatpush1.msra.mxu0 0.0
    %711 = vmatprep.subr.mxu0 0.0
    %712 = vmatpush1.msra.mxu0 0.0
    %713 = vmatprep.subr.mxu0 0.0
    %714 = vmatpush1.msra.mxu0 0.0
    %715 = vmatprep.subr.mxu0 0.0
    %716 = vmatpush1.msra.mxu0 0.0
    %717 = vmatprep.subr.mxu0 0.0
    %718 = vmatpush1.msra.mxu0 0.0
    %719 = vmatprep.subr.mxu0 0.0
    %720 = vmatpush1.msra.mxu0 0.0
    %721 = vmatprep.subr.mxu0 0.0
    %722 = vmatpush1.msra.mxu0 0.0
    %723 = vmatprep.subr.mxu0 0.0
    %724 = vmatpush1.msra.mxu0 0.0
    %725 = vmatprep.subr.mxu0 0.0
    %726 = vmatpush1.msra.mxu0 0.0
    %727 = vmatprep.subr.mxu0 0.0
    %728 = vmatpush1.msra.mxu0 0.0
    %729 = vmatprep.subr.mxu0 0.0
    %730 = vmatpush1.msra.mxu0 0.0
    %731 = vmatprep.subr.mxu0 0.0
    %732 = vmatpush1.msra.mxu0 0.0
    %733 = vmatprep.subr.mxu0 0.0
    %734 = vmatpush1.msra.mxu0 0.0
    %735 = vmatprep.subr.mxu0 0.0
    %736 = vmatpush1.msra.mxu0 0.0
    %737 = vmatprep.subr.mxu0 0.0
    %738 = vmatpush1.msra.mxu0 0.0
    %739 = vmatprep.subr.mxu0 0.0
    %740 = vmatpush1.msra.mxu0 0.0
    %741 = vmatprep.subr.mxu0 0.0
    %742 = vmatpush1.msra.mxu0 0.0
    %743 = vmatprep.subr.mxu0 0.0
    %744 = vmatpush1.msra.mxu0 0.0
    %745 = vmatprep.subr.mxu0 0.0
    %746 = vmatpush1.msra.mxu0 0.0
    %747 = vmatprep.subr.mxu0 0.0
    %748 = vmatpush1.msra.mxu0 0.0
    %749 = vmatprep.subr.mxu0 0.0
    %750 = vmatpush1.msra.mxu0 0.0
    %751 = vmatprep.subr.mxu0 0.0
    %752 = vmatpush1.msra.mxu0 0.0
    %753 = vmatprep.subr.mxu0 0.0
    %754 = vmatpush1.msra.mxu0 0.0
    %755 = vmatprep.mubr.f32.mxu0 0.0
    %756 = vmatmul.mubr.f32.gmra.mrb[0].mxu0 %v686
    %v757 = vpop.f32.mrb[0].mxu0
    %v758 = vadd.f32 %v677, %v757
    %v759 = vpop.f32.mrb[0].mxu0
    %760 = vmatprep.mubr.f32.mxu0 0.0
    %761 = vmatmul.mubr.f32.gmra.mrb[0].mxu0 %v689
    %v762 = vpop.f32.mrb[0].mxu0
    %v763 = vadd.f32 %v682, %v762
    %v764 = vpop.f32.mrb[0].mxu0
    %765 = vdwg.mxu0
    %v766 = vld [vmem:[#allocation5 + $0x270] sm:$0xff]
    %v767 = vld [vmem:[#allocation5 + $0x278] sm:$0xff]
    %v768 = vmul.f32 %v208, %v766
    %v769 = vmul.f32 %v213, %v767
    %v771 = vsel %vm134, %v768, 0
    %v774 = vsel %vm134, %v769, 0
    %776 = vmatprep.subr.mxu0 0.0
    %777 = vmatpush1.xpose.msra.mxu0 %v391
    %778 = vmatprep.subr.mxu0 0.0
    %779 = vmatpush1.xpose.msra.mxu0 %v394
    %780 = vmatprep.subr.mxu0 0.0
    %781 = vmatpush1.xpose.msra.mxu0 0.0
    %782 = vmatprep.subr.mxu0 0.0
    %783 = vmatpush1.xpose.msra.mxu0 0.0
    %784 = vmatprep.subr.mxu0 0.0
    %785 = vmatpush1.xpose.msra.mxu0 0.0
    %786 = vmatprep.subr.mxu0 0.0
    %787 = vmatpush1.xpose.msra.mxu0 0.0
    %788 = vmatprep.subr.mxu0 0.0
    %789 = vmatpush1.xpose.msra.mxu0 0.0
    %790 = vmatprep.subr.mxu0 0.0
    %791 = vmatpush1.xpose.msra.mxu0 0.0
    %792 = vmatprep.subr.mxu0 0.0
    %793 = vmatpush1.xpose.msra.mxu0 0.0
    %794 = vmatprep.subr.mxu0 0.0
    %795 = vmatpush1.xpose.msra.mxu0 0.0
    %796 = vmatprep.subr.mxu0 0.0
    %797 = vmatpush1.xpose.msra.mxu0 0.0
    %798 = vmatprep.subr.mxu0 0.0
    %799 = vmatpush1.xpose.msra.mxu0 0.0
    %800 = vmatprep.subr.mxu0 0.0
    %801 = vmatpush1.xpose.msra.mxu0 0.0
    %802 = vmatprep.subr.mxu0 0.0
    %803 = vmatpush1.xpose.msra.mxu0 0.0
    %804 = vmatprep.subr.mxu0 0.0
    %805 = vmatpush1.xpose.msra.mxu0 0.0
    %806 = vmatprep.subr.mxu0 0.0
    %807 = vmatpush1.xpose.msra.mxu0 0.0
    %808 = vmatprep.subr.mxu0 0.0
    %809 = vmatpush1.xpose.msra.mxu0 0.0
    %810 = vmatprep.subr.mxu0 0.0
    %811 = vmatpush1.xpose.msra.mxu0 0.0
    %812 = vmatprep.subr.mxu0 0.0
    %813 = vmatpush1.xpose.msra.mxu0 0.0
    %814 = vmatprep.subr.mxu0 0.0
    %815 = vmatpush1.xpose.msra.mxu0 0.0
    %816 = vmatprep.subr.mxu0 0.0
    %817 = vmatpush1.xpose.msra.mxu0 0.0
    %818 = vmatprep.subr.mxu0 0.0
    %819 = vmatpush1.xpose.msra.mxu0 0.0
    %820 = vmatprep.subr.mxu0 0.0
    %821 = vmatpush1.xpose.msra.mxu0 0.0
    %822 = vmatprep.subr.mxu0 0.0
    %823 = vmatpush1.xpose.msra.mxu0 0.0
    %824 = vmatprep.subr.mxu0 0.0
    %825 = vmatpush1.xpose.msra.mxu0 0.0
    %826 = vmatprep.subr.mxu0 0.0
    %827 = vmatpush1.xpose.msra.mxu0 0.0
    %828 = vmatprep.subr.mxu0 0.0
    %829 = vmatpush1.xpose.msra.mxu0 0.0
    %830 = vmatprep.subr.mxu0 0.0
    %831 = vmatpush1.xpose.msra.mxu0 0.0
    %832 = vmatprep.subr.mxu0 0.0
    %833 = vmatpush1.xpose.msra.mxu0 0.0
    %834 = vmatprep.subr.mxu0 0.0
    %835 = vmatpush1.xpose.msra.mxu0 0.0
    %836 = vmatprep.subr.mxu0 0.0
    %837 = vmatpush1.xpose.msra.mxu0 0.0
    %838 = vmatprep.subr.mxu0 0.0
    %839 = vmatpush1.xpose.msra.mxu0 0.0
    %840 = vmatprep.mubr.f32.mxu0 0.0
    %841 = vmatmul.mubr.f32.gmra.mrb[0].mxu0 %v771
    %v842 = vpop.f32.mrb[0].mxu0
    %v843 = vadd.f32 %v378, %v842
    %v844 = vpop.f32.mrb[0].mxu0
    %845 = vmatprep.mubr.f32.mxu0 0.0
    %846 = vmatmul.mubr.f32.gmra.mrb[0].mxu0 %v774
    %v847 = vpop.f32.mrb[0].mxu0
    %v848 = vadd.f32 %v379, %v847
    %v849 = vpop.f32.mrb[0].mxu0
    %850 = vdwg.mxu0
    %v851 = vsel %vm46, %v843, -inf
    %852 = vmax.xlane.f32.xlu0 %v851
    %v853 = vpop.xlane.xlu0 %852
    %v854 = vsel %vm46, %v848, -inf
    %855 = vmax.xlane.f32.xlu0 %v854
    %v856 = vpop.xlane.xlu0 %855
    %v857 = vsub.f32 %v843, %v853
    %v858 = vsub.f32 %v848, %v856
    %v859 = vmul.f32 %v857, 1.442695
    %v860 = vpow.pop %v859
    %v861 = vmul.f32 %v858, 1.442695
    %v862 = vpow.pop %v861
    %v863 = vsel %vm46, %v860, 0.0
    %864 = vadd.xlane.f32.xlu0 %v863
    %v865 = vpop.xlane.xlu0 %864
    %v866 = vsel %vm46, %v862, 0.0
    %867 = vadd.xlane.f32.xlu0 %v866
    %v868 = vpop.xlane.xlu0 %867
    %v869 = vrcp.pop %v865
    %v870 = vrcp.pop %v868
    %v871 = vmul.f32 %v860, %v869
    %v872 = vmul.f32 %v862, %v870
    %v873 = vmul.f32 %v370, %v766
    %v874 = vmul.f32 %v375, %v767
    %v876 = vsel %vm46, %v871, 0
    %v879 = vsel %vm46, %v872, 0
    %881 = vmatprep.subr.mxu0 0.0
    %882 = vmatpush1.msra.mxu0 %v873
    %883 = vmatprep.subr.mxu0 0.0
    %884 = vmatpush1.msra.mxu0 %v874
    %885 = vmatprep.subr.mxu0 0.0
    %886 = vmatpush1.msra.mxu0 0.0
    %887 = vmatprep.subr.mxu0 0.0
    %888 = vmatpush1.msra.mxu0 0.0
    %889 = vmatprep.subr.mxu0 0.0
    %890 = vmatpush1.msra.mxu0 0.0
    %891 = vmatprep.subr.mxu0 0.0
    %892 = vmatpush1.msra.mxu0 0.0
    %893 = vmatprep.subr.mxu0 0.0
    %894 = vmatpush1.msra.mxu0 0.0
    %895 = vmatprep.subr.mxu0 0.0
    %896 = vmatpush1.msra.mxu0 0.0
    %897 = vmatprep.subr.mxu0 0.0
    %898 = vmatpush1.msra.mxu0 0.0
    %899 = vmatprep.subr.mxu0 0.0
    %900 = vmatpush1.msra.mxu0 0.0
    %901 = vmatprep.subr.mxu0 0.0
    %902 = vmatpush1.msra.mxu0 0.0
    %903 = vmatprep.subr.mxu0 0.0
    %904 = vmatpush1.msra.mxu0 0.0
    %905 = vmatprep.subr.mxu0 0.0
    %906 = vmatpush1.msra.mxu0 0.0
    %907 = vmatprep.subr.mxu0 0.0
    %908 = vmatpush1.msra.mxu0 0.0
    %909 = vmatprep.subr.mxu0 0.0
    %910 = vmatpush1.msra.mxu0 0.0
    %911 = vmatprep.subr.mxu0 0.0
    %912 = vmatpush1.msra.mxu0 0.0
    %913 = vmatprep.subr.mxu0 0.0
    %914 = vmatpush1.msra.mxu0 0.0
    %915 = vmatprep.subr.mxu0 0.0
    %916 = vmatpush1.msra.mxu0 0.0
    %917 = vmatprep.subr.mxu0 0.0
    %918 = vmatpush1.msra.mxu0 0.0
    %919 = vmatprep.subr.mxu0 0.0
    %920 = vmatpush1.msra.mxu0 0.0
    %921 = vmatprep.subr.mxu0 0.0
    %922 = vmatpush1.msra.mxu0 0.0
    %923 = vmatprep.subr.mxu0 0.0
    %924 = vmatpush1.msra.mxu0 0.0
    %925 = vmatprep.subr.mxu0 0.0
    %926 = vmatpush1.msra.mxu0 0.0
    %927 = vmatprep.subr.mxu0 0.0
    %928 = vmatpush1.msra.mxu0 0.0
    %929 = vmatprep.subr.mxu0 0.0
    %930 = vmatpush1.msra.mxu0 0.0
    %931 = vmatprep.subr.mxu0 0.0
    %932 = vmatpush1.msra.mxu0 0.0
    %933 = vmatprep.subr.mxu0 0.0
    %934 = vmatpush1.msra.mxu0 0.0
    %935 = vmatprep.subr.mxu0 0.0
    %936 = vmatpush1.msra.mxu0 0.0
    %937 = vmatprep.subr.mxu0 0.0
    %938 = vmatpush1.msra.mxu0 0.0
    %939 = vmatprep.subr.mxu0 0.0
    %940 = vmatpush1.msra.mxu0 0.0
    %941 = vmatprep.subr.mxu0 0.0
    %942 = vmatpush1.msra.mxu0 0.0
    %943 = vmatprep.subr.mxu0 0.0
    %944 = vmatpush1.msra.mxu0 0.0
    %945 = vmatprep.mubr.f32.mxu0 0.0
    %946 = vmatmul.mubr.f32.gmra.mrb[0].mxu0 %v876
    %v947 = vpop.f32.mrb[0].mxu0
    %v948 = vadd.f32 0.0, %v947
    %v949 = vpop.f32.mrb[0].mxu0
    %950 = vmatprep.mubr.f32.mxu0 0.0
    %951 = vmatmul.mubr.f32.gmra.mrb[0].mxu0 %v879
    %v952 = vpop.f32.mrb[0].mxu0
    %v953 = vadd.f32 0.0, %v952
    %v954 = vpop.f32.mrb[0].mxu0
    %955 = vdwg.mxu0
    %v956 = vadd.f32 %v758, %v948
    %v957 = vadd.f32 %v763, %v953
    %v958 = vld [vmem:[#allocation5 + $0x280] sm:$0xff]
    %v959 = vld [vmem:[#allocation5 + $0x288] sm:$0xff]
    %v960 = vmul.f32 %v208, %v958
    %v961 = vmul.f32 %v213, %v959
    %v963 = vsel %vm134, %v960, 0
    %v966 = vsel %vm134, %v961, 0
    %968 = vmatprep.subr.mxu0 0.0
    %969 = vmatpush1.xpose.msra.mxu0 %v391
    %970 = vmatprep.subr.mxu0 0.0
    %971 = vmatpush1.xpose.msra.mxu0 %v394
    %972 = vmatprep.subr.mxu0 0.0
    %973 = vmatpush1.xpose.msra.mxu0 0.0
    %974 = vmatprep.subr.mxu0 0.0
    %975 = vmatpush1.xpose.msra.mxu0 0.0
    %976 = vmatprep.subr.mxu0 0.0
    %977 = vmatpush1.xpose.msra.mxu0 0.0
    %978 = vmatprep.subr.mxu0 0.0
    %979 = vmatpush1.xpose.msra.mxu0 0.0
    %980 = vmatprep.subr.mxu0 0.0
    %981 = vmatpush1.xpose.msra.mxu0 0.0
    %982 = vmatprep.subr.mxu0 0.0
    %983 = vmatpush1.xpose.msra.mxu0 0.0
    %984 = vmatprep.subr.mxu0 0.0
    %985 = vmatpush1.xpose.msra.mxu0 0.0
    %986 = vmatprep.subr.mxu0 0.0
    %987 = vmatpush1.xpose.msra.mxu0 0.0
    %988 = vmatprep.subr.mxu0 0.0
    %989 = vmatpush1.xpose.msra.mxu0 0.0
    %990 = vmatprep.subr.mxu0 0.0
    %991 = vmatpush1.xpose.msra.mxu0 0.0
    %992 = vmatprep.subr.mxu0 0.0
    %993 = vmatpush1.xpose.msra.mxu0 0.0
    %994 = vmatprep.subr.mxu0 0.0
    %995 = vmatpush1.xpose.msra.mxu0 0.0
    %996 = vmatprep.subr.mxu0 0.0
    %997 = vmatpush1.xpose.msra.mxu0 0.0
    %998 = vmatprep.subr.mxu0 0.0
    %999 = vmatpush1.xpose.msra.mxu0 0.0
    %1000 = vmatprep.subr.mxu0 0.0
    %1001 = vmatpush1.xpose.msra.mxu0 0.0
    %1002 = vmatprep.subr.mxu0 0.0
    %1003 = vmatpush1.xpose.msra.mxu0 0.0
    %1004 = vmatprep.subr.mxu0 0.0
    %1005 = vmatpush1.xpose.msra.mxu0 0.0
    %1006 = vmatprep.subr.mxu0 0.0
    %1007 = vmatpush1.xpose.msra.mxu0 0.0
    %1008 = vmatprep.subr.mxu0 0.0
    %1009 = vmatpush1.xpose.msra.mxu0 0.0
    %1010 = vmatprep.subr.mxu0 0.0
    %1011 = vmatpush1.xpose.msra.mxu0 0.0
    %1012 = vmatprep.subr.mxu0 0.0
    %1013 = vmatpush1.xpose.msra.mxu0 0.0
    %1014 = vmatprep.subr.mxu0 0.0
    %1015 = vmatpush1.xpose.msra.mxu0 0.0
    %1016 = vmatprep.subr.mxu0 0.0
    %1017 = vmatpush1.xpose.msra.mxu0 0.0
    %1018 = vmatprep.subr.mxu0 0.0
    %1019 = vmatpush1.xpose.msra.mxu0 0.0
    %1020 = vmatprep.subr.mxu0 0.0
    %1021 = vmatpush1.xpose.msra.mxu0 0.0
    %1022 = vmatprep.subr.mxu0 0.0
    %1023 = vmatpush1.xpose.msra.mxu0 0.0
    %1024 = vmatprep.subr.mxu0 0.0
    %1025 = vmatpush1.xpose.msra.mxu0 0.0
    %1026 = vmatprep.subr.mxu0 0.0
    %1027 = vmatpush1.xpose.msra.mxu0 0.0
    %1028 = vmatprep.subr.mxu0 0.0
    %1029 = vmatpush1.xpose.msra.mxu0 0.0
    %1030 = vmatprep.subr.mxu0 0.0
    %1031 = vmatpush1.xpose.msra.mxu0 0.0
    %1032 = vmatprep.mubr.f32.mxu0 0.0
    %1033 = vmatmul.mubr.f32.gmra.mrb[0].mxu0 %v963
    %v1034 = vpop.f32.mrb[0].mxu0
    %v1035 = vadd.f32 %v378, %v1034
    %v1036 = vpop.f32.mrb[0].mxu0
    %1037 = vmatprep.mubr.f32.mxu0 0.0
    %1038 = vmatmul.mubr.f32.gmra.mrb[0].mxu0 %v966
    %v1039 = vpop.f32.mrb[0].mxu0
    %v1040 = vadd.f32 %v379, %v1039
    %v1041 = vpop.f32.mrb[0].mxu0
    %1042 = vdwg.mxu0
    %v1043 = vsel %vm46, %v1035, -inf
    %1044 = vmax.xlane.f32.xlu0 %v1043
    %v1045 = vpop.xlane.xlu0 %1044
    %v1046 = vsel %vm46, %v1040, -inf
    %1047 = vmax.xlane.f32.xlu0 %v1046
    %v1048 = vpop.xlane.xlu0 %1047
    %v1049 = vsub.f32 %v1035, %v1045
    %v1050 = vsub.f32 %v1040, %v1048
    %v1051 = vmul.f32 %v1049, 1.442695
    %v1052 = vpow.pop %v1051
    %v1053 = vmul.f32 %v1050, 1.442695
    %v1054 = vpow.pop %v1053
    %v1055 = vsel %vm46, %v1052, 0.0
    %1056 = vadd.xlane.f32.xlu0 %v1055
    %v1057 = vpop.xlane.xlu0 %1056
    %v1058 = vsel %vm46, %v1054, 0.0
    %1059 = vadd.xlane.f32.xlu0 %v1058
    %v1060 = vpop.xlane.xlu0 %1059
    %v1061 = vrcp.pop %v1057
    %v1062 = vrcp.pop %v1060
    %v1063 = vmul.f32 %v1052, %v1061
    %v1064 = vmul.f32 %v1054, %v1062
    %v1065 = vmul.f32 %v370, %v958
    %v1066 = vmul.f32 %v375, %v959
    %v1068 = vsel %vm46, %v1063, 0
    %v1071 = vsel %vm46, %v1064, 0
    %1073 = vmatprep.subr.mxu0 0.0
    %1074 = vmatpush1.msra.mxu0 %v1065
    %1075 = vmatprep.subr.mxu0 0.0
    %1076 = vmatpush1.msra.mxu0 %v1066
    %1077 = vmatprep.subr.mxu0 0.0
    %1078 = vmatpush1.msra.mxu0 0.0
    %1079 = vmatprep.subr.mxu0 0.0
    %1080 = vmatpush1.msra.mxu0 0.0
    %1081 = vmatprep.subr.mxu0 0.0
    %1082 = vmatpush1.msra.mxu0 0.0
    %1083 = vmatprep.subr.mxu0 0.0
    %1084 = vmatpush1.msra.mxu0 0.0
    %1085 = vmatprep.subr.mxu0 0.0
    %1086 = vmatpush1.msra.mxu0 0.0
    %1087 = vmatprep.subr.mxu0 0.0
    %1088 = vmatpush1.msra.mxu0 0.0
    %1089 = vmatprep.subr.mxu0 0.0
    %1090 = vmatpush1.msra.mxu0 0.0
    %1091 = vmatprep.subr.mxu0 0.0
    %1092 = vmatpush1.msra.mxu0 0.0
    %1093 = vmatprep.subr.mxu0 0.0
    %1094 = vmatpush1.msra.mxu0 0.0
    %1095 = vmatprep.subr.mxu0 0.0
    %1096 = vmatpush1.msra.mxu0 0.0
    %1097 = vmatprep.subr.mxu0 0.0
    %1098 = vmatpush1.msra.mxu0 0.0
    %1099 = vmatprep.subr.mxu0 0.0
    %1100 = vmatpush1.msra.mxu0 0.0
    %1101 = vmatprep.subr.mxu0 0.0
    %1102 = vmatpush1.msra.mxu0 0.0
    %1103 = vmatprep.subr.mxu0 0.0
    %1104 = vmatpush1.msra.mxu0 0.0
    %1105 = vmatprep.subr.mxu0 0.0
    %1106 = vmatpush1.msra.mxu0 0.0
    %1107 = vmatprep.subr.mxu0 0.0
    %1108 = vmatpush1.msra.mxu0 0.0
    %1109 = vmatprep.subr.mxu0 0.0
    %1110 = vmatpush1.msra.mxu0 0.0
    %1111 = vmatprep.subr.mxu0 0.0
    %1112 = vmatpush1.msra.mxu0 0.0
    %1113 = vmatprep.subr.mxu0 0.0
    %1114 = vmatpush1.msra.mxu0 0.0
    %1115 = vmatprep.subr.mxu0 0.0
    %1116 = vmatpush1.msra.mxu0 0.0
    %1117 = vmatprep.subr.mxu0 0.0
    %1118 = vmatpush1.msra.mxu0 0.0
    %1119 = vmatprep.subr.mxu0 0.0
    %1120 = vmatpush1.msra.mxu0 0.0
    %1121 = vmatprep.subr.mxu0 0.0
    %1122 = vmatpush1.msra.mxu0 0.0
    %1123 = vmatprep.subr.mxu0 0.0
    %1124 = vmatpush1.msra.mxu0 0.0
    %1125 = vmatprep.subr.mxu0 0.0
    %1126 = vmatpush1.msra.mxu0 0.0
    %1127 = vmatprep.subr.mxu0 0.0
    %1128 = vmatpush1.msra.mxu0 0.0
    %1129 = vmatprep.subr.mxu0 0.0
    %1130 = vmatpush1.msra.mxu0 0.0
    %1131 = vmatprep.subr.mxu0 0.0
    %1132 = vmatpush1.msra.mxu0 0.0
    %1133 = vmatprep.subr.mxu0 0.0
    %1134 = vmatpush1.msra.mxu0 0.0
    %1135 = vmatprep.subr.mxu0 0.0
    %1136 = vmatpush1.msra.mxu0 0.0
    %1137 = vmatprep.mubr.f32.mxu0 0.0
    %1138 = vmatmul.mubr.f32.gmra.mrb[0].mxu0 %v1068
    %v1139 = vpop.f32.mrb[0].mxu0
    %v1140 = vadd.f32 0.0, %v1139
    %v1141 = vpop.f32.mrb[0].mxu0
    %1142 = vmatprep.mubr.f32.mxu0 0.0
    %1143 = vmatmul.mubr.f32.gmra.mrb[0].mxu0 %v1071
    %v1144 = vpop.f32.mrb[0].mxu0
    %v1145 = vadd.f32 0.0, %v1144
    %v1146 = vpop.f32.mrb[0].mxu0
    %1147 = vdwg.mxu0
    %v1148 = vadd.f32 %v956, %v1140
    %v1149 = vadd.f32 %v957, %v1145
    %v1150 = vld [vmem:[#allocation5 + $0xb0] sm:$0xff]
    %v1151 = vld [vmem:[#allocation5 + $0xb8] sm:$0xff]
    %v1152 = vld [vmem:[#allocation5 + $0xc0] sm:$0xff]
    %v1153 = vld [vmem:[#allocation5 + $0xc8] sm:$0xff]
    %v1154 = vld [vmem:[#allocation5 + $0xd0] sm:$0xff]
    %v1155 = vld [vmem:[#allocation5 + $0xd8] sm:$0xff]
    %v1157 = vsel %vm134, %v1148, 0
    %v1160 = vsel %vm134, %v1149, 0
    %1162 = vmatprep.subr.mxu0 0.0
    %1163 = vmatpush1.msra.mxu0 %v1150
    %1164 = vmatprep.subr.mxu0 0.0
    %1165 = vmatpush1.msra.mxu0 %v1151
    %1166 = vmatprep.subr.mxu0 0.0
    %1167 = vmatpush1.msra.mxu0 %v1152
    %1168 = vmatprep.subr.mxu0 0.0
    %1169 = vmatpush1.msra.mxu0 %v1153
    %1170 = vmatprep.subr.mxu0 0.0
    %1171 = vmatpush1.msra.mxu0 0.0
    %1172 = vmatprep.subr.mxu0 0.0
    %1173 = vmatpush1.msra.mxu0 0.0
    %1174 = vmatprep.subr.mxu0 0.0
    %1175 = vmatpush1.msra.mxu0 0.0
    %1176 = vmatprep.subr.mxu0 0.0
    %1177 = vmatpush1.msra.mxu0 0.0
    %1178 = vmatprep.subr.mxu0 0.0
    %1179 = vmatpush1.msra.mxu0 0.0
    %1180 = vmatprep.subr.mxu0 0.0
    %1181 = vmatpush1.msra.mxu0 0.0
    %1182 = vmatprep.subr.mxu0 0.0
    %1183 = vmatpush1.msra.mxu0 0.0
    %1184 = vmatprep.subr.mxu0 0.0
    %1185 = vmatpush1.msra.mxu0 0.0
    %1186 = vmatprep.subr.mxu0 0.0
    %1187 = vmatpush1.msra.mxu0 0.0
    %1188 = vmatprep.subr.mxu0 0.0
    %1189 = vmatpush1.msra.mxu0 0.0
    %1190 = vmatprep.subr.mxu0 0.0
    %1191 = vmatpush1.msra.mxu0 0.0
    %1192 = vmatprep.subr.mxu0 0.0
    %1193 = vmatpush1.msra.mxu0 0.0
    %1194 = vmatprep.subr.mxu0 0.0
    %1195 = vmatpush1.msra.mxu0 0.0
    %1196 = vmatprep.subr.mxu0 0.0
    %1197 = vmatpush1.msra.mxu0 0.0
    %1198 = vmatprep.subr.mxu0 0.0
    %1199 = vmatpush1.msra.mxu0 0.0
    %1200 = vmatprep.subr.mxu0 0.0
    %1201 = vmatpush1.msra.mxu0 0.0
    %1202 = vmatprep.subr.mxu0 0.0
    %1203 = vmatpush1.msra.mxu0 0.0
    %1204 = vmatprep.subr.mxu0 0.0
    %1205 = vmatpush1.msra.mxu0 0.0
    %1206 = vmatprep.subr.mxu0 0.0
    %1207 = vmatpush1.msra.mxu0 0.0
    %1208 = vmatprep.subr.mxu0 0.0
    %1209 = vmatpush1.msra.mxu0 0.0
    %1210 = vmatprep.subr.mxu0 0.0
    %1211 = vmatpush1.msra.mxu0 0.0
    %1212 = vmatprep.subr.mxu0 0.0
    %1213 = vmatpush1.msra.mxu0 0.0
    %1214 = vmatprep.subr.mxu0 0.0
    %1215 = vmatpush1.msra.mxu0 0.0
    %1216 = vmatprep.subr.mxu0 0.0
    %1217 = vmatpush1.msra.mxu0 0.0
    %1218 = vmatprep.subr.mxu0 0.0
    %1219 = vmatpush1.msra.mxu0 0.0
    %1220 = vmatprep.subr.mxu0 0.0
    %1221 = vmatpush1.msra.mxu0 0.0
    %1222 = vmatprep.subr.mxu0 0.0
    %1223 = vmatpush1.msra.mxu0 0.0
    %1224 = vmatprep.subr.mxu0 0.0
    %1225 = vmatpush1.msra.mxu0 0.0
    %1226 = vmatprep.mubr.f32.mxu0 0.0
    %1227 = vmatmul.mubr.f32.gmra.mrb[0].mxu0 %v1157
    %v1228 = vpop.f32.mrb[0].mxu0
    %v1229 = vadd.f32 %v1154, %v1228
    %v1230 = vpop.f32.mrb[0].mxu0
    %1231 = vmatprep.mubr.f32.mxu0 0.0
    %1232 = vmatmul.mubr.f32.gmra.mrb[0].mxu0 %v1160
    %v1233 = vpop.f32.mrb[0].mxu0
    %v1234 = vadd.f32 %v1155, %v1233
    %v1235 = vpop.f32.mrb[0].mxu0
    %1236 = vdwg.mxu0
    %v1237 = vadd.f32 %v120, %v1229
    %v1238 = vadd.f32 %v125, %v1234
    %v1239 = vsel %vm134, %v1237, 0.0
    %1240 = vadd.xlane.f32.xlu0 %v1239
    %v1241 = vpop.xlane.xlu0 %1240
    %v1242 = vsel %vm134, %v1238, 0.0
    %1243 = vadd.xlane.f32.xlu0 %v1242
    %v1244 = vpop.xlane.xlu0 %1243
    %v1245 = vrcp.pop 32.0
    %v1246 = vmul.f32 %v1241, %v1245
    %v1247 = vmul.f32 %v1244, %v1245
    %v1248 = vsub.f32 %v1237, %v1246
    %v1249 = vsub.f32 %v1238, %v1247
    %v1250 = vmul.f32 %v1248, %v1248
    %v1251 = vmul.f32 %v1249, %v1249
    %v1252 = vsel %vm134, %v1250, 0.0
    %1253 = vadd.xlane.f32.xlu0 %v1252
    %v1254 = vpop.xlane.xlu0 %1253
    %v1255 = vsel %vm134, %v1251, 0.0
    %1256 = vadd.xlane.f32.xlu0 %v1255
    %v1257 = vpop.xlane.xlu0 %1256
    %v1258 = vmul.f32 %v1254, %v1245
    %v1259 = vmul.f32 %v1257, %v1245
    %v1260 = vadd.f32 %v1258, 1e-05
    %v1261 = vadd.f32 %v1259, 1e-05
    %v1262 = vrsqrt.pop %v1260
    %v1263 = vrsqrt.pop %v1261
    %v1264 = vmul.f32 %v1248, %v1262
    %v1265 = vmul.f32 %v1249, %v1263
    %v1266 = vld [vmem:[#allocation5 + $0xe0] sm:$0xff]
    %v1267 = vld [vmem:[#allocation5 + $0xe8] sm:$0xff]
    %v1268 = vmul.f32 %v1264, %v1266
    %v1269 = vmul.f32 %v1265, %v1267
    %v1270 = vld [vmem:[#allocation5 + $0xf0] sm:$0xff]
    %v1271 = vld [vmem:[#allocation5 + $0xf8] sm:$0xff]
    %v1272 = vadd.f32 %v1268, %v1270
    %v1273 = vadd.f32 %v1269, %v1271
    %v1274 = vld [vmem:[#allocation5 + $0x100] sm:$0xff]
    %v1275 = vld [vmem:[#allocation5 + $0x108] sm:$0xff]
    %v1276 = vld [vmem:[#allocation5 + $0x110] sm:$0xff]
    %v1277 = vld [vmem:[#allocation5 + $0x118] sm:$0xff]
    %v1278 = vld [vmem:[#allocation5 + $0x120] sm:$0xff]
    %v1279 = vld [vmem:[#allocation5 + $0x128] sm:$0xff]
    %v1281 = vsel %vm134, %v1272, 0
    %v1284 = vsel %vm134, %v1273, 0
    %1286 = vmatprep.subr.mxu0 0.0
    %1287 = vmatpush1.msra.mxu0 %v1274
    %1288 = vmatprep.subr.mxu0 0.0
    %1289 = vmatpush1.msra.mxu0 %v1275
    %1290 = vmatprep.subr.mxu0 0.0
    %1291 = vmatpush1.msra.mxu0 %v1276
    %1292 = vmatprep.subr.mxu0 0.0
    %1293 = vmatpush1.msra.mxu0 %v1277
    %1294 = vmatprep.subr.mxu0 0.0
    %1295 = vmatpush1.msra.mxu0 0.0
    %1296 = vmatprep.subr.mxu0 0.0
    %1297 = vmatpush1.msra.mxu0 0.0
    %1298 = vmatprep.subr.mxu0 0.0
    %1299 = vmatpush1.msra.mxu0 0.0
    %1300 = vmatprep.subr.mxu0 0.0
    %1301 = vmatpush1.msra.mxu0 0.0
    %1302 = vmatprep.subr.mxu0 0.0
    %1303 = vmatpush1.msra.mxu0 0.0
    %1304 = vmatprep.subr.mxu0 0.0
    %1305 = vmatpush1.msra.mxu0 0.0
    %1306 = vmatprep.subr.mxu0 0.0
    %1307 = vmatpush1.msra.mxu0 0.0
    %1308 = vmatprep.subr.mxu0 0.0
    %1309 = vmatpush1.msra.mxu0 0.0
    %1310 = vmatprep.subr.mxu0 0.0
    %1311 = vmatpush1.msra.mxu0 0.0
    %1312 = vmatprep.subr.mxu0 0.0
    %1313 = vmatpush1.msra.mxu0 0.0
    %1314 = vmatprep.subr.mxu0 0.0
    %1315 = vmatpush1.msra.mxu0 0.0
    %1316 = vmatprep.subr.mxu0 0.0
    %1317 = vmatpush1.msra.mxu0 0.0
    %1318 = vmatprep.subr.mxu0 0.0
    %1319 = vmatpush1.msra.mxu0 0.0
    %1320 = vmatprep.subr.mxu0 0.0
    %1321 = vmatpush1.msra.mxu0 0.0
    %1322 = vmatprep.subr.mxu0 0.0
    %1323 = vmatpush1.msra.mxu0 0.0
    %1324 = vmatprep.subr.mxu0 0.0
    %1325 = vmatpush1.msra.mxu0 0.0
    %1326 = vmatprep.subr.mxu0 0.0
    %1327 = vmatpush1.msra.mxu0 0.0
    %1328 = vmatprep.subr.mxu0 0.0
    %1329 = vmatpush1.msra.mxu0 0.0
    %1330 = vmatprep.subr.mxu0 0.0
    %1331 = vmatpush1.msra.mxu0 0.0
    %1332 = vmatprep.subr.mxu0 0.0
    %1333 = vmatpush1.msra.mxu0 0.0
    %1334 = vmatprep.subr.mxu0 0.0
    %1335 = vmatpush1.msra.mxu0 0.0
    %1336 = vmatprep.subr.mxu0 0.0
    %1337 = vmatpush1.msra.mxu0 0.0
    %1338 = vmatprep.subr.mxu0 0.0
    %1339 = vmatpush1.msra.mxu0 0.0
    %1340 = vmatprep.subr.mxu0 0.0
    %1341 = vmatpush1.msra.mxu0 0.0
    %1342 = vmatprep.subr.mxu0 0.0
    %1343 = vmatpush1.msra.mxu0 0.0
    %1344 = vmatprep.subr.mxu0 0.0
    %1345 = vmatpush1.msra.mxu0 0.0
    %1346 = vmatprep.subr.mxu0 0.0
    %1347 = vmatpush1.msra.mxu0 0.0
    %1348 = vmatprep.subr.mxu0 0.0
    %1349 = vmatpush1.msra.mxu0 0.0
    %1350 = vmatprep.mubr.f32.mxu0 0.0
    %1351 = vmatmul.mubr.f32.gmra.mrb[0].mxu0 %v1281
    %v1352 = vpop.f32.mrb[0].mxu0
    %v1353 = vadd.f32 %v1278, %v1352
    %v1354 = vpop.f32.mrb[0].mxu0
    %1355 = vmatprep.mubr.f32.mxu0 0.0
    %1356 = vmatmul.mubr.f32.gmra.mrb[0].mxu0 %v1284
    %v1357 = vpop.f32.mrb[0].mxu0
    %v1358 = vadd.f32 %v1279, %v1357
    %v1359 = vpop.f32.mrb[0].mxu0
    %1360 = vdwg.mxu0
    %v1361 = vmax.f32 %v1353, 0.0
    %v1362 = vmax.f32 %v1358, 0.0
    %v1363 = vld [vmem:[#allocation5 + $0x130] sm:$0xff]
    %v1364 = vld [vmem:[#allocation5 + $0x138] sm:$0xff]
    %v1365 = vld [vmem:[#allocation5 + $0x140] sm:$0xff]
    %v1366 = vld [vmem:[#allocation5 + $0x148] sm:$0xff]
    %v1367 = vld [vmem:[#allocation5 + $0x150] sm:$0xff]
    %v1368 = vld [vmem:[#allocation5 + $0x158] sm:$0xff]
    %v1369 = vld [vmem:[#allocation5 + $0x160] sm:$0xff]
    %v1370 = vld [vmem:[#allocation5 + $0x168] sm:$0xff]
    %v1371 = vld [vmem:[#allocation5 + $0x170] sm:$0xff]
    %v1372 = vld [vmem:[#allocation5 + $0x178] sm:$0xff]
    %v1373 = vld [vmem:[#allocation5 + $0x180] sm:$0xff]
    %v1374 = vld [vmem:[#allocation5 + $0x188] sm:$0xff]
    %v1375 = vld [vmem:[#allocation5 + $0x190] sm:$0xff]
    %v1376 = vld [vmem:[#allocation5 + $0x198] sm:$0xff]
    %v1377 = vld [vmem:[#allocation5 + $0x1a0] sm:$0xff]
    %v1378 = vld [vmem:[#allocation5 + $0x1a8] sm:$0xff]
    %v1379 = vld [vmem:[#allocation5 + $0x1b0] sm:$0xff]
    %v1380 = vld [vmem:[#allocation5 + $0x1b8] sm:$0xff]
    %1381 = vmatprep.subr.mxu0 0.0
    %1382 = vmatpush1.msra.mxu0 %v1363
    %1383 = vmatprep.subr.mxu0 0.0
    %1384 = vmatpush1.msra.mxu0 %v1364
    %1385 = vmatprep.subr.mxu0 0.0
    %1386 = vmatpush1.msra.mxu0 %v1365
    %1387 = vmatprep.subr.mxu0 0.0
    %1388 = vmatpush1.msra.mxu0 %v1366
    %1389 = vmatprep.subr.mxu0 0.0
    %1390 = vmatpush1.msra.mxu0 %v1367
    %1391 = vmatprep.subr.mxu0 0.0
    %1392 = vmatpush1.msra.mxu0 %v1368
    %1393 = vmatprep.subr.mxu0 0.0
    %1394 = vmatpush1.msra.mxu0 %v1369
    %1395 = vmatprep.subr.mxu0 0.0
    %1396 = vmatpush1.msra.mxu0 %v1370
    %1397 = vmatprep.subr.mxu0 0.0
    %1398 = vmatpush1.msra.mxu0 %v1371
    %1399 = vmatprep.subr.mxu0 0.0
    %1400 = vmatpush1.msra.mxu0 %v1372
    %1401 = vmatprep.subr.mxu0 0.0
    %1402 = vmatpush1.msra.mxu0 %v1373
    %1403 = vmatprep.subr.mxu0 0.0
    %1404 = vmatpush1.msra.mxu0 %v1374
    %1405 = vmatprep.subr.mxu0 0.0
    %1406 = vmatpush1.msra.mxu0 %v1375
    %1407 = vmatprep.subr.mxu0 0.0
    %1408 = vmatpush1.msra.mxu0 %v1376
    %1409 = vmatprep.subr.mxu0 0.0
    %1410 = vmatpush1.msra.mxu0 %v1377
    %1411 = vmatprep.subr.mxu0 0.0
    %1412 = vmatpush1.msra.mxu0 %v1378
    %1413 = vmatprep.subr.mxu0 0.0
    %1414 = vmatpush1.msra.mxu0 0.0
    %1415 = vmatprep.subr.mxu0 0.0
    %1416 = vmatpush1.msra.mxu0 0.0
    %1417 = vmatprep.subr.mxu0 0.0
    %1418 = vmatpush1.msra.mxu0 0.0
    %1419 = vmatprep.subr.mxu0 0.0
    %1420 = vmatpush1.msra.mxu0 0.0
    %1421 = vmatprep.subr.mxu0 0.0
    %1422 = vmatpush1.msra.mxu0 0.0
    %1423 = vmatprep.subr.mxu0 0.0
    %1424 = vmatpush1.msra.mxu0 0.0
    %1425 = vmatprep.subr.mxu0 0.0
    %1426 = vmatpush1.msra.mxu0 0.0
    %1427 = vmatprep.subr.mxu0 0.0
    %1428 = vmatpush1.msra.mxu0 0.0
    %1429 = vmatprep.subr.mxu0 0.0
    %1430 = vmatpush1.msra.mxu0 0.0
    %1431 = vmatprep.subr.mxu0 0.0
    %1432 = vmatpush1.msra.mxu0 0.0
    %1433 = vmatprep.subr.mxu0 0.0
    %1434 = vmatpush1.msra.mxu0 0.0
    %1435 = vmatprep.subr.mxu0 0.0
    %1436 = vmatpush1.msra.mxu0 0.0
    %1437 = vmatprep.subr.mxu0 0.0
    %1438 = vmatpush1.msra.mxu0 0.0
    %1439 = vmatprep.subr.mxu0 0.0
    %1440 = vmatpush1.msra.mxu0 0.0
    %1441 = vmatprep.subr.mxu0 0.0
    %1442 = vmatpush1.msra.mxu0 0.0
    %1443 = vmatprep.subr.mxu0 0.0
    %1444 = vmatpush1.msra.mxu0 0.0
    %1445 = vmatprep.mubr.f32.mxu0 0.0
    %1446 = vmatmul.mubr.f32.gmra.mrb[0].mxu0 %v1361
    %v1447 = vpop.f32.mrb[0].mxu0
    %v1448 = vadd.f32 %v1379, %v1447
    %v1449 = vpop.f32.mrb[0].mxu0
    %1450 = vmatprep.mubr.f32.mxu0 0.0
    %1451 = vmatmul.mubr.f32.gmra.mrb[0].mxu0 %v1362
    %v1452 = vpop.f32.mrb[0].mxu0
    %v1453 = vadd.f32 %v1380, %v1452
    %v1454 = vpop.f32.mrb[0].mxu0
    %1455 = vdwg.mxu0
    %v1456 = vadd.f32 %v1272, %v1448
    %v1457 = vadd.f32 %v1273, %v1453
    %v1458 = vsel %vm134, %v1456, 0.0
    %1459 = vadd.xlane.f32.xlu0 %v1458
    %v1460 = vpop.xlane.xlu0 %1459
    %v1461 = vsel %vm134, %v1457, 0.0
    %1462 = vadd.xlane.f32.xlu0 %v1461
    %v1463 = vpop.xlane.xlu0 %1462
    %v1464 = vmul.f32 %v1460, %v1245
    %v1465 = vmul.f32 %v1463, %v1245
    %v1466 = vsub.f32 %v1456, %v1464
    %v1467 = vsub.f32 %v1457, %v1465
    %v1468 = vmul.f32 %v1466, %v1466
    %v1469 = vmul.f32 %v1467, %v1467
    %v1470 = vsel %vm134, %v1468, 0.0
    %1471 = vadd.xlane.f32.xlu0 %v1470
    %v1472 = vpop.xlane.xlu0 %1471
    %v1473 = vsel %vm134, %v1469, 0.0
    %1474 = vadd.xlane.f32.xlu0 %v1473
    %v1475 = vpop.xlane.xlu0 %1474
    %v1476 = vmul.f32 %v1472, %v1245
    %v1477 = vmul.f32 %v1475, %v1245
    %v1478 = vadd.f32 %v1476, 1e-05
    %v1479 = vadd.f32 %v1477, 1e-05
    %v1480 = vrsqrt.pop %v1478
    %v1481 = vrsqrt.pop %v1479
    %v1482 = vmul.f32 %v1466, %v1480
    %v1483 = vmul.f32 %v1467, %v1481
    %v1484 = vld [vmem:[#allocation5 + $0x1c0] sm:$0xff]
    %v1485 = vld [vmem:[#allocation5 + $0x1c8] sm:$0xff]
    %v1486 = vmul.f32 %v1482, %v1484
    %v1487 = vmul.f32 %v1483, %v1485
    %v1488 = vld [vmem:[#allocation5 + $0x1d0] sm:$0xff]
    %v1489 = vld [vmem:[#allocation5 + $0x1d8] sm:$0xff]
    %v1490 = vadd.f32 %v1486, %v1488
    %v1491 = vadd.f32 %v1487, %v1489
    %v1492 = vld [vmem:[#allocation5 + $0x1e0] sm:$0xff]
    %v1493 = vld [vmem:[#allocation5 + $0x1e8] sm:$0xff]
    %v1494 = vld [vmem:[#allocation5 + $0x1f0] sm:$0xff]
    %v1495 = vld [vmem:[#allocation5 + $0x1f8] sm:$0xff]
    %v1497 = vsel %vm134, %v1490, 0
    %v1500 = vsel %vm134, %v1491, 0
    %1502 = vmatprep.subr.mxu0 0.0
    %1503 = vmatpush1.msra.mxu0 %v1492
    %1504 = vmatprep.subr.mxu0 0.0
    %1505 = vmatpush1.msra.mxu0 %v1493
    %1506 = vmatprep.subr.mxu0 0.0
    %1507 = vmatpush1.msra.mxu0 %v1494
    %1508 = vmatprep.subr.mxu0 0.0
    %1509 = vmatpush1.msra.mxu0 %v1495
    %1510 = vmatprep.subr.mxu0 0.0
    %1511 = vmatpush1.msra.mxu0 0.0
    %1512 = vmatprep.subr.mxu0 0.0
    %1513 = vmatpush1.msra.mxu0 0.0
    %1514 = vmatprep.subr.mxu0 0.0
    %1515 = vmatpush1.msra.mxu0 0.0
    %1516 = vmatprep.subr.mxu0 0.0
    %1517 = vmatpush1.msra.mxu0 0.0
    %1518 = vmatprep.subr.mxu0 0.0
    %1519 = vmatpush1.msra.mxu0 0.0
    %1520 = vmatprep.subr.mxu0 0.0
    %1521 = vmatpush1.msra.mxu0 0.0
    %1522 = vmatprep.subr.mxu0 0.0
    %1523 = vmatpush1.msra.mxu0 0.0
    %1524 = vmatprep.subr.mxu0 0.0
    %1525 = vmatpush1.msra.mxu0 0.0
    %1526 = vmatprep.subr.mxu0 0.0
    %1527 = vmatpush1.msra.mxu0 0.0
    %1528 = vmatprep.subr.mxu0 0.0
    %1529 = vmatpush1.msra.mxu0 0.0
    %1530 = vmatprep.subr.mxu0 0.0
    %1531 = vmatpush1.msra.mxu0 0.0
    %1532 = vmatprep.subr.mxu0 0.0
    %1533 = vmatpush1.msra.mxu0 0.0
    %1534 = vmatprep.subr.mxu0 0.0
    %1535 = vmatpush1.msra.mxu0 0.0
    %1536 = vmatprep.subr.mxu0 0.0
    %1537 = vmatpush1.msra.mxu0 0.0
    %1538 = vmatprep.subr.mxu0 0.0
    %1539 = vmatpush1.msra.mxu0 0.0
    %1540 = vmatprep.subr.mxu0 0.0
    %1541 = vmatpush1.msra.mxu0 0.0
    %1542 = vmatprep.subr.mxu0 0.0
    %1543 = vmatpush1.msra.mxu0 0.0
    %1544 = vmatprep.subr.mxu0 0.0
    %1545 = vmatpush1.msra.mxu0 0.0
    %1546 = vmatprep.subr.mxu0 0.0
    %1547 = vmatpush1.msra.mxu0 0.0
    %1548 = vmatprep.subr.mxu0 0.0
    %1549 = vmatpush1.msra.mxu0 0.0
    %1550 = vmatprep.subr.mxu0 0.0
    %1551 = vmatpush1.msra.mxu0 0.0
    %1552 = vmatprep.subr.mxu0 0.0
    %1553 = vmatpush1.msra.mxu0 0.0
    %1554 = vmatprep.subr.mxu0 0.0
    %1555 = vmatpush1.msra.mxu0 0.0
    %1556 = vmatprep.subr.mxu0 0.0
    %1557 = vmatpush1.msra.mxu0 0.0
    %1558 = vmatprep.subr.mxu0 0.0
    %1559 = vmatpush1.msra.mxu0 0.0
    %1560 = vmatprep.subr.mxu0 0.0
    %1561 = vmatpush1.msra.mxu0 0.0
    %1562 = vmatprep.subr.mxu0 0.0
    %1563 = vmatpush1.msra.mxu0 0.0
    %1564 = vmatprep.subr.mxu0 0.0
    %1565 = vmatpush1.msra.mxu0 0.0
    %1566 = vmatprep.mubr.f32.mxu0 0.0
    %1567 = vmatmul.mubr.f32.gmra.mrb[0].mxu0 %v1497
    %v1568 = vpop.f32.mrb[0].mxu0
    %v1569 = vadd.f32 0.0, %v1568
    %v1570 = vpop.f32.mrb[0].mxu0
    %1571 = vmatprep.mubr.f32.mxu0 0.0
    %1572 = vmatmul.mubr.f32.gmra.mrb[0].mxu0 %v1500
    %v1573 = vpop.f32.mrb[0].mxu0
    %v1574 = vadd.f32 0.0, %v1573
    %v1575 = vpop.f32.mrb[0].mxu0
    %1576 = vdwg.mxu0
    %v1577 = vld [vmem:[#allocation5 + $0x2a0] sm:$0xff]
    %v1578 = vld [vmem:[#allocation5 + $0x2a8] sm:$0xff]
    %v1579 = vmul.f32 %v1569, %v1577
    %v1580 = vmul.f32 %v1574, %v1578
    %v1581 = vld [vmem:[#allocation5 + $0x200] sm:$0xff]
    %v1582 = vld [vmem:[#allocation5 + $0x208] sm:$0xff]
    %v1583 = vld [vmem:[#allocation5 + $0x210] sm:$0xff]
    %v1584 = vld [vmem:[#allocation5 + $0x218] sm:$0xff]
    %v1585 = vld [vmem:[#allocation5 + $0x220] sm:$0xff]
    %v1586 = vld [vmem:[#allocation5 + $0x228] sm:$0xff]
    %v1587 = vld [vmem:[#allocation5 + $0x230] sm:$0xff]
    %v1588 = vld [vmem:[#allocation5 + $0x238] sm:$0xff]
    %vm1589 = vcmask 523264
    %v1591 = vsel %vm1589, %v1579, 0
    %v1594 = vsel %vm1589, %v1580, 0
    %1596 = vmatprep.subr.mxu0 0.0
    %1597 = vmatpush1.msra.mxu0 %v1581
    %1598 = vmatprep.subr.mxu0 0.0
    %1599 = vmatpush1.msra.mxu0 %v1582
    %1600 = vmatprep.subr.mxu0 0.0
    %1601 = vmatpush1.msra.mxu0 %v1583
    %1602 = vmatprep.subr.mxu0 0.0
    %1603 = vmatpush1.msra.mxu0 %v1584
    %1604 = vmatprep.subr.mxu0 0.0
    %1605 = vmatpush1.msra.mxu0 %v1585
    %1606 = vmatprep.subr.mxu0 0.0
    %1607 = vmatpush1.msra.mxu0 %v1586
    %1608 = vmatprep.subr.mxu0 0.0
    %1609 = vmatpush1.msra.mxu0 %v1587
    %1610 = vmatprep.subr.mxu0 0.0
    %1611 = vmatpush1.msra.mxu0 %v1588
    %1612 = vmatprep.subr.mxu0 0.0
    %1613 = vmatpush1.msra.mxu0 0.0
    %1614 = vmatprep.subr.mxu0 0.0
    %1615 = vmatpush1.msra.mxu0 0.0
    %1616 = vmatprep.subr.mxu0 0.0
    %1617 = vmatpush1.msra.mxu0 0.0
    %1618 = vmatprep.subr.mxu0 0.0
    %1619 = vmatpush1.msra.mxu0 0.0
    %1620 = vmatprep.subr.mxu0 0.0
    %1621 = vmatpush1.msra.mxu0 0.0
    %1622 = vmatprep.subr.mxu0 0.0
    %1623 = vmatpush1.msra.mxu0 0.0
    %1624 = vmatprep.subr.mxu0 0.0
    %1625 = vmatpush1.msra.mxu0 0.0
    %1626 = vmatprep.subr.mxu0 0.0
    %1627 = vmatpush1.msra.mxu0 0.0
    %1628 = vmatprep.subr.mxu0 0.0
    %1629 = vmatpush1.msra.mxu0 0.0
    %1630 = vmatprep.subr.mxu0 0.0
    %1631 = vmatpush1.msra.mxu0 0.0
    %1632 = vmatprep.subr.mxu0 0.0
    %1633 = vmatpush1.msra.mxu0 0.0
    %1634 = vmatprep.subr.mxu0 0.0
    %1635 = vmatpush1.msra.mxu0 0.0
    %1636 = vmatprep.subr.mxu0 0.0
    %1637 = vmatpush1.msra.mxu0 0.0
    %1638 = vmatprep.subr.mxu0 0.0
    %1639 = vmatpush1.msra.mxu0 0.0
    %1640 = vmatprep.subr.mxu0 0.0
    %1641 = vmatpush1.msra.mxu0 0.0
    %1642 = vmatprep.subr.mxu0 0.0
    %1643 = vmatpush1.msra.mxu0 0.0
    %1644 = vmatprep.subr.mxu0 0.0
    %1645 = vmatpush1.msra.mxu0 0.0
    %1646 = vmatprep.subr.mxu0 0.0
    %1647 = vmatpush1.msra.mxu0 0.0
    %1648 = vmatprep.subr.mxu0 0.0
    %1649 = vmatpush1.msra.mxu0 0.0
    %1650 = vmatprep.subr.mxu0 0.0
    %1651 = vmatpush1.msra.mxu0 0.0
    %1652 = vmatprep.subr.mxu0 0.0
    %1653 = vmatpush1.msra.mxu0 0.0
    %1654 = vmatprep.subr.mxu0 0.0
    %1655 = vmatpush1.msra.mxu0 0.0
    %1656 = vmatprep.subr.mxu0 0.0
    %1657 = vmatpush1.msra.mxu0 0.0
    %1658 = vmatprep.subr.mxu0 0.0
    %1659 = vmatpush1.msra.mxu0 0.0
    %1660 = vmatprep.mubr.f32.mxu0 0.0
    %1661 = vmatmul.mubr.f32.gmra.mrb[0].mxu0 %v1591
    %v1662 = vpop.f32.mrb[0].mxu0
    %v1663 = vadd.f32 0.0, %v1662
    %v1664 = vpop.f32.mrb[0].mxu0
    %1665 = vmatprep.mubr.f32.mxu0 0.0
    %1666 = vmatmul.mubr.f32.gmra.mrb[0].mxu0 %v1594
    %v1667 = vpop.f32.mrb[0].mxu0
    %v1668 = vadd.f32 0.0, %v1667
    %v1669 = vpop.f32.mrb[0].mxu0
    %1670 = vdwg.mxu0
    %v1671 = vld [vmem:[#allocation5 + $0x240] sm:$0x3]
    %v1672 = vld [vmem:[#allocation5 + $0x248] sm:$0x3]
    %v1674 = vsel %vm46, %v1671, 0
    %1676 = vmatprep.subr.mxu0 0.0
    %1677 = vmatpush1.msra.mxu0 %v1663
    %1678 = vmatprep.subr.mxu0 0.0
    %1679 = vmatpush1.msra.mxu0 %v1668
    %1680 = vmatprep.subr.mxu0 0.0
    %1681 = vmatpush1.msra.mxu0 0.0
    %1682 = vmatprep.subr.mxu0 0.0
    %1683 = vmatpush1.msra.mxu0 0.0
    %1684 = vmatprep.subr.mxu0 0.0
    %1685 = vmatpush1.msra.mxu0 0.0
    %1686 = vmatprep.subr.mxu0 0.0
    %1687 = vmatpush1.msra.mxu0 0.0
    %1688 = vmatprep.subr.mxu0 0.0
    %1689 = vmatpush1.msra.mxu0 0.0
    %1690 = vmatprep.subr.mxu0 0.0
    %1691 = vmatpush1.msra.mxu0 0.0
    %1692 = vmatprep.subr.mxu0 0.0
    %1693 = vmatpush1.msra.mxu0 0.0
    %1694 = vmatprep.subr.mxu0 0.0
    %1695 = vmatpush1.msra.mxu0 0.0
    %1696 = vmatprep.subr.mxu0 0.0
    %1697 = vmatpush1.msra.mxu0 0.0
    %1698 = vmatprep.subr.mxu0 0.0
    %1699 = vmatpush1.msra.mxu0 0.0
    %1700 = vmatprep.subr.mxu0 0.0
    %1701 = vmatpush1.msra.mxu0 0.0
    %1702 = vmatprep.subr.mxu0 0.0
    %1703 = vmatpush1.msra.mxu0 0.0
    %1704 = vmatprep.subr.mxu0 0.0
    %1705 = vmatpush1.msra.mxu0 0.0
    %1706 = vmatprep.subr.mxu0 0.0
    %1707 = vmatpush1.msra.mxu0 0.0
    %1708 = vmatprep.subr.mxu0 0.0
    %1709 = vmatpush1.msra.mxu0 0.0
    %1710 = vmatprep.subr.mxu0 0.0
    %1711 = vmatpush1.msra.mxu0 0.0
    %1712 = vmatprep.subr.mxu0 0.0
    %1713 = vmatpush1.msra.mxu0 0.0
    %1714 = vmatprep.subr.mxu0 0.0
    %1715 = vmatpush1.msra.mxu0 0.0
    %1716 = vmatprep.subr.mxu0 0.0
    %1717 = vmatpush1.msra.mxu0 0.0
    %1718 = vmatprep.subr.mxu0 0.0
    %1719 = vmatpush1.msra.mxu0 0.0
    %1720 = vmatprep.subr.mxu0 0.0
    %1721 = vmatpush1.msra.mxu0 0.0
    %1722 = vmatprep.subr.mxu0 0.0
    %1723 = vmatpush1.msra.mxu0 0.0
    %1724 = vmatprep.subr.mxu0 0.0
    %1725 = vmatpush1.msra.mxu0 0.0
    %1726 = vmatprep.subr.mxu0 0.0
    %1727 = vmatpush1.msra.mxu0 0.0
    %1728 = vmatprep.subr.mxu0 0.0
    %1729 = vmatpush1.msra.mxu0 0.0
    %1730 = vmatprep.subr.mxu0 0.0
    %1731 = vmatpush1.msra.mxu0 0.0
    %1732 = vmatprep.subr.mxu0 0.0
    %1733 = vmatpush1.msra.mxu0 0.0
    %1734 = vmatprep.subr.mxu0 0.0
    %1735 = vmatpush1.msra.mxu0 0.0
    %1736 = vmatprep.subr.mxu0 0.0
    %1737 = vmatpush1.msra.mxu0 0.0
    %1738 = vmatprep.subr.mxu0 0.0
    %1739 = vmatpush1.msra.mxu0 0.0
    %1740 = vmatprep.mubr.f32.mxu0 0.0
    %1741 = vmatmul.mubr.f32.gmra.mrb[0].mxu0 %v1674
    %v1742 = vpop.f32.mrb[0].mxu0
    %v1743 = vadd.f32 %v1672, %v1742
    %v1744 = vpop.f32.mrb[0].mxu0
    %1745 = vdwg.mxu0
    %vm1746 = vcmask 58368
    %1747 = vst.msk [vmem:[#allocation7] sm:$0x3] %vm1746, %v1743
    // Predicated region
    $region18: #{tpu_custom_call.1} parent=1 // pred_check
      _
    $region19: #{tpu_custom_call.1} parent=1 // pred_check_branch
      %1749 = sbr.rel (0) target = $region21
    $region20: #{tpu_custom_call.1} parent=1 // pred_region
      %s1751 = ssub.s32 32, 32
      %1752 = vsyncadd [#allocation4], %s1751
      %s1754 = sshll.u32 [#allocation7], 4
      %s1755 = int_to_ptr.vmem [resolvable:$true] %s1754
      %1757 = dma.vmem_to_hbm [thread:$0]  %s1755, 32, %s2, [#allocation4]
    $region21: #{tpu_custom_call.1} parent=1 // pred_fallthru
      _
    // Predicated region
    $region22: #{tpu_custom_call.1} parent=1 // pred_check
      _
    $region23: #{tpu_custom_call.1} parent=1 // pred_check_branch
      %1759 = sbr.rel (0) target = $region25
    $region24: #{tpu_custom_call.1} parent=1 // pred_region
      %1760 = dma.done [#allocation4], 32
    $region25: #{tpu_custom_call.1} parent=1 // pred_fallthru
      _
    %1761 = vsyncpa [#allocation3], 1
    %1762 = vsyncpa [#allocation6], 1
    %1763 = vsyncpa [#allocation4], 1

</llo_original>
